<compile_context>
chip_gen: v7x
topology: tpu7x:2x2x1
jax: 0.10.0
libtpu: 0.0.40
codegen_flags: <defaults>
</compile_context>

<pallas_src>
import jax
import jax.numpy as jnp
import numpy as np
from jax.experimental import pallas as pl
from jax.experimental.pallas import tpu as pltpu


def oracle_kernel(x_ref, w_ref, labels_ref, probs_ref, mask_ref):
    """One row-tile of the Oracle hot path.

    x_ref:      [TILE_N, D]  f32
    w_ref:      [D, 2]       f32   (col 0 = small model, col 1 = large model)
    labels_ref: [TILE_N, 1]  i32   (binary labels)
    probs_ref:  [TILE_N, 1]  f32   routed probabilities
    mask_ref:   [TILE_N, 1]  i8    large_mask (1 = routed to large model)
    """
    x = x_ref[...]                                                        # [TILE_N, D]
    # Fused matvec: both models' logits in one MXU pass.
    logits = jnp.dot(x, w_ref[...], preferred_element_type=jnp.float32)  # [TILE_N, 2]

    # sigmoid(z) > 0.5  <=>  z > 0 : predictions from logit sign (no sigmoid needed).
    small_pred_b = logits[:, 0:1] > 0.0                                   # [TILE_N, 1]
    large_pred_b = logits[:, 1:2] > 0.0                                   # [TILE_N, 1]
    label_b = labels_ref[...] != 0                                        # [TILE_N, 1]

    # large_mask = (small_pred != label) & (large_pred == label)
    large_mask = jnp.logical_and(small_pred_b != label_b, large_pred_b == label_b)

    # Route first, sigmoid once (EUP exp/recip only on the selected column).
    routed_logit = jnp.where(large_mask, logits[:, 1:2], logits[:, 0:1])
    probs_ref[...] = jax.nn.sigmoid(routed_logit)
    mask_ref[...] = large_mask.astype(jnp.int8)


def _pick_tile_n(n, d):
    """Row tile sized so a double-buffered x block fits comfortably in scoped VMEM
    on every generation (v5e 16 MiB default, v7x has half the physical VMEM)."""
    budget_bytes = 2 * 1024 * 1024            # per x buffer
    t = (budget_bytes // (d * 4)) // 8 * 8
    t = max(8, min(1024, t))                  # 512-1024 sweet spot, 8-row floor
    return min(t, max(8, ((n + 7) // 8) * 8))


def oracle_forward(x, w_small, w_large, labels, *, tile_n=None):
    """x: [N, D] f32, w_small/w_large: [D, 1] f32, labels: [N] int (0/1)."""
    N, D = x.shape
    if tile_n is None:
        tile_n = _pick_tile_n(N, D)
    n_tiles = pl.cdiv(N, tile_n)              # ragged final block handled by Pallas

    labels_i32 = labels.astype(jnp.int32)
    labels2d = labels_i32.reshape(N, 1)

    # Fuse the two [D, 1] weight vectors into one [D, 2] RHS.
    w2 = jnp.concatenate([w_small, w_large], axis=1).astype(jnp.float32)

    routed_probs, large_mask = pl.pallas_call(
        oracle_kernel,
        out_shape=(
            jax.ShapeDtypeStruct((N, 1), jnp.float32),   # routed probs
            jax.ShapeDtypeStruct((N, 1), jnp.int8),      # large_mask
        ),
        grid_spec=pltpu.PrefetchScalarGridSpec(
            num_scalar_prefetch=0,
            grid=(n_tiles,),
            in_specs=[
                pl.BlockSpec((tile_n, D), lambda i: (i, 0)),   # x row tile (double-buffered)
                pl.BlockSpec((D, 2), lambda i: (0, 0)),        # fused weights (resident)
                pl.BlockSpec((tile_n, 1), lambda i: (i, 0)),   # labels row tile
            ],
            out_specs=(
                pl.BlockSpec((tile_n, 1), lambda i: (i, 0)),
                pl.BlockSpec((tile_n, 1), lambda i: (i, 0)),
            ),
        ),
        compiler_params=pltpu.CompilerParams(
            dimension_semantics=("parallel",),                 # shardable across TCs (v7x)
        ),
    )(x, w2, labels2d)

    # ---- host glue (O(N), no sort) ------------------------------------------------
    probs1d = routed_probs[:, 0]
    mask_b = large_mask[:, 0].astype(bool)

    # routed preds == (routed_probs > 0.5) exactly (see kernel routing).
    # TODO(synk): torch returns int64 preds/labels; int32 here.
    preds1d = (probs1d > 0.5).astype(jnp.int32)

    num_large = jnp.sum(mask_b.astype(jnp.int32))
    num_small = N - num_large

    # Stable partition via prefix sums: small-routed rows first (original order),
    # then large-routed rows (original order) — matches torch.cat([small, large]).
    cs_small = jnp.cumsum(jnp.logical_not(mask_b).astype(jnp.int32)) - 1
    cs_large = num_small + jnp.cumsum(mask_b.astype(jnp.int32)) - 1
    dest = jnp.where(mask_b, cs_large, cs_small)

    probs_out = jnp.zeros((N,), jnp.float32).at[dest].set(probs1d)
    preds_out = jnp.zeros((N,), jnp.int32).at[dest].set(preds1d)
    labels_out = jnp.zeros((N,), jnp.int32).at[dest].set(labels_i32)

    return {
        "num_large": num_large,
        "probs": probs_out,
        "preds": preds_out,
        "final_labels": labels_out,
    }


def _reference(x, w_small, w_large, labels):
    """Pure-JAX reference of the Oracle forward semantics."""
    sp = jax.nn.sigmoid(x @ w_small)[:, 0]
    lp = jax.nn.sigmoid(x @ w_large)[:, 0]
    spred = (sp > 0.5).astype(jnp.int32)
    lpred = (lp > 0.5).astype(jnp.int32)
    lab = labels.astype(jnp.int32)
    lmask = jnp.logical_and(spred != lab, lpred == lab)
    smask = ~lmask
    probs = jnp.concatenate([sp[smask], lp[lmask]])
    preds = jnp.concatenate([spred[smask], lpred[lmask]])
    flabels = jnp.concatenate([lab[smask], lab[lmask]])
    return {
        "num_large": jnp.sum(lmask.astype(jnp.int32)),
        "probs": probs,
        "preds": preds,
        "final_labels": flabels,
    }


if __name__ == "__main__":
    # Small shapes, non-trivial grid: 3 row tiles of 128, last one ragged (44 valid rows).
    N, D = 300, 128
    key = jax.random.PRNGKey(0)
    kx, kws, kwl, klab = jax.random.split(key, 4)

    x = jax.random.normal(kx, (N, D), dtype=jnp.float32)
    w_small = 0.1 * jax.random.normal(kws, (D, 1), dtype=jnp.float32)
    w_large = 0.1 * jax.random.normal(kwl, (D, 1), dtype=jnp.float32)
    labels = jax.random.bernoulli(klab, 0.5, (N,)).astype(jnp.int32)

    out = oracle_forward(x, w_small, w_large, labels, tile_n=128)
    jax.block_until_ready(out)

    ref = _reference(x, w_small, w_large, labels)
    np.testing.assert_allclose(np.asarray(out["probs"]), np.asarray(ref["probs"]),
                               rtol=1e-5, atol=1e-5)
    np.testing.assert_array_equal(np.asarray(out["preds"]), np.asarray(ref["preds"]))
    np.testing.assert_array_equal(np.asarray(out["final_labels"]),
                                  np.asarray(ref["final_labels"]))
    assert int(out["num_large"]) == int(ref["num_large"])

    print("KERNEL_OK")
</pallas_src>

<mosaic_0001>
module attributes {stable_mosaic.version = 11 : i64} {
  func.func @oracle_kernel(%arg0: i32, %arg1: memref<128x128xf32, #tpu.memory_space<vmem>>, %arg2: memref<128x2xf32, #tpu.memory_space<vmem>>, %arg3: memref<128x1xi32, #tpu.memory_space<vmem>>, %arg4: memref<128x1xf32, #tpu.memory_space<vmem>>, %arg5: memref<128x1xi8, #tpu.memory_space<vmem>>) attributes {dimension_semantics = [#tpu.dimension_semantics<parallel>], iteration_bounds = array<i64: 3>, scalar_prefetch = 0 : i64, scratch_operands = 0 : i64, tpu.core_type = #tpu.core_type<tc>, window_params = [{transform_indices = @transform_0, window_bounds = array<i64: 128, 128>}, {pipeline_mode = #tpu.pipeline_mode<synchronous>, transform_indices = @transform_1, window_bounds = array<i64: 128, 2>}, {transform_indices = @transform_2, window_bounds = array<i64: 128, 1>}, {transform_indices = @transform_3, window_bounds = array<i64: 128, 1>}, {transform_indices = @transform_4, window_bounds = array<i64: 128, 1>}]} {
    %c0 = arith.constant 0 : index
    %c0_0 = arith.constant 0 : index
    %0 = vector.load %arg1[%c0, %c0_0] : memref<128x128xf32, #tpu.memory_space<vmem>>, vector<128x128xf32>
    %c0_1 = arith.constant 0 : index
    %c0_2 = arith.constant 0 : index
    %1 = vector.load %arg2[%c0_1, %c0_2] : memref<128x2xf32, #tpu.memory_space<vmem>>, vector<128x2xf32>
    %cst = arith.constant dense<0.000000e+00> : vector<128x2xf32>
    %2 = tpu.matmul %0, %1, %cst {dimension_numbers = #tpu.dot_dimension_numbers<[1], [0], [0], [1], [0, 0, 1, 1], [], []>} : vector<128x128xf32>, vector<128x2xf32>, vector<128x2xf32> -> vector<128x2xf32>
    %3 = vector.extract_strided_slice %2 {offsets = [0, 0], sizes = [128, 1], strides = [1, 1]} : vector<128x2xf32> to vector<128x1xf32>
    %cst_3 = arith.constant 0.000000e+00 : f32
    %4 = vector.broadcast %cst_3 : f32 to vector<128x1xf32>
    %5 = arith.cmpf ogt, %3, %4 : vector<128x1xf32>
    %6 = vector.extract_strided_slice %2 {offsets = [0, 1], sizes = [128, 1], strides = [1, 1]} : vector<128x2xf32> to vector<128x1xf32>
    %cst_4 = arith.constant 0.000000e+00 : f32
    %7 = vector.broadcast %cst_4 : f32 to vector<128x1xf32>
    %8 = arith.cmpf ogt, %6, %7 : vector<128x1xf32>
    %c0_5 = arith.constant 0 : index
    %c0_6 = arith.constant 0 : index
    %9 = vector.load %arg3[%c0_5, %c0_6] : memref<128x1xi32, #tpu.memory_space<vmem>>, vector<128x1xi32>
    %c0_i32 = arith.constant 0 : i32
    %10 = vector.broadcast %c0_i32 : i32 to vector<128x1xi32>
    %11 = arith.cmpi ne, %9, %10 : vector<128x1xi32>
    %12 = arith.xori %5, %11 : vector<128x1xi1>
    %13 = arith.xori %8, %11 : vector<128x1xi1>
    %cst_7 = arith.constant dense<true> : vector<128x1xi1>
    %14 = arith.xori %13, %cst_7 : vector<128x1xi1>
    %15 = arith.andi %12, %14 : vector<128x1xi1>
    %16 = vector.extract_strided_slice %2 {offsets = [0, 1], sizes = [128, 1], strides = [1, 1]} : vector<128x2xf32> to vector<128x1xf32>
    %17 = vector.extract_strided_slice %2 {offsets = [0, 0], sizes = [128, 1], strides = [1, 1]} : vector<128x2xf32> to vector<128x1xf32>
    %18 = arith.select %15, %16, %17 : vector<128x1xi1>, vector<128x1xf32>
    %19 = arith.negf %18 : vector<128x1xf32>
    %20 = math.exp %19 : vector<128x1xf32>
    %cst_8 = arith.constant 1.000000e+00 : f32
    %21 = vector.broadcast %cst_8 : f32 to vector<128x1xf32>
    %22 = arith.addf %21, %20 : vector<128x1xf32>
    %23 = arith.divf %21, %22 : vector<128x1xf32>
    %c0_9 = arith.constant 0 : index
    %c0_10 = arith.constant 0 : index
    %24 = vector.load %arg4[%c0_9, %c0_10] : memref<128x1xf32, #tpu.memory_space<vmem>>, vector<128x1xf32>
    tpu.vector_store %arg4[%c0_9, %c0_10], %23 {strides = array<i32>} : memref<128x1xf32, #tpu.memory_space<vmem>>, vector<128x1xf32>,
    %25 = arith.extui %15 : vector<128x1xi1> to vector<128x1xi8>
    %c0_11 = arith.constant 0 : index
    %c0_12 = arith.constant 0 : index
    %26 = vector.load %arg5[%c0_11, %c0_12] : memref<128x1xi8, #tpu.memory_space<vmem>>, vector<128x1xi8>
    tpu.vector_store %arg5[%c0_11, %c0_12], %25 {strides = array<i32>} : memref<128x1xi8, #tpu.memory_space<vmem>>, vector<128x1xi8>,
    return
  }
  func.func @transform_0(%arg0: i32) -> (i32, i32) {
    %c0_i32 = arith.constant 0 : i32
    %c0_i32_0 = arith.constant 0 : i32
    return %arg0, %c0_i32 : i32, i32
  }
  func.func @transform_1(%arg0: i32) -> (i32, i32) {
    %c0_i32 = arith.constant 0 : i32
    %c0_i32_0 = arith.constant 0 : i32
    %c0_i32_1 = arith.constant 0 : i32
    return %c0_i32, %c0_i32_0 : i32, i32
  }
  func.func @transform_2(%arg0: i32) -> (i32, i32) {
    %c0_i32 = arith.constant 0 : i32
    %c0_i32_0 = arith.constant 0 : i32
    return %arg0, %c0_i32 : i32, i32
  }
  func.func @transform_3(%arg0: i32) -> (i32, i32) {
    %c0_i32 = arith.constant 0 : i32
    %c0_i32_0 = arith.constant 0 : i32
    return %arg0, %c0_i32 : i32, i32
  }
  func.func @transform_4(%arg0: i32) -> (i32, i32) {
    %c0_i32 = arith.constant 0 : i32
    %c0_i32_0 = arith.constant 0 : i32
    return %arg0, %c0_i32 : i32, i32
  }
}

</mosaic_0001>

<llo_original>
// kernel: tpu_custom_call.1
$region0: #{tpu_custom_call.1}
  #allocation0 [shape = 'u32[]', space=smem, size = 0x4, offset = 0x4, fixed_abs, tag = 'smem constant byte address 0x4 - core index']
  #allocation1 [shape = 'u32[144,128]{1,0:T(1,128)}', space=vmem, size = 0x12000, scoped, tag = 'internal scratch']
  %s0 = inlined_call_operand.vmem [shape: f32[300,128], index: 0, kind: input, shape index: {}]
  %s1 = inlined_call_operand.vmem [shape: f32[128,2], index: 1, kind: input, shape index: {}]
  %s2 = inlined_call_operand.vmem [shape: s32[300,1], index: 2, kind: input, shape index: {}]
  %s3 = inlined_call_operand.vmem [shape: f32[300,1], index: 3, kind: output, shape index: {0}]
  %s4 = inlined_call_operand.vmem [shape: s8[300,1], index: 4, kind: output, shape index: {1}]
  %5 = xla_tuple %s3, %s4
  %s6 = sld [smem:[#allocation0]]
  $region145: #{tpu_custom_call.1} parent=0
    _
  %s8 = ssub.s32 1, %s6
  %s9 = scalar_select 0, %s8, %s6
  $region1: #{tpu_custom_call.1} parent=0
    #allocation2 [shape = 'u8[131072]{0}', space=vmem, size = 0x20000, scoped, tag = 'output window, operand 0']
    #allocation3 [shape = 'u8[32768]{0}', space=vmem, size = 0x8000, scoped, tag = 'output window, operand 1']
    loop: start=0, step=1, limit=5
    $region2: #{tpu_custom_call.1} parent=1 // loop_pre_header
      _
    $region3: #{tpu_custom_call.1} parent=1 // loop_header
      %s11 = sphi 0, %s15
      %p12 = scmp.ge.s32.totalorder %s11, 5
      %s21 = sphi 0, %s23
      %s24 = sphi 0, %s21
      %s25 = sphi 0, %s24
      %s41 = sphi 0, %s25
      %s45 = sphi 0, %s45
      %s47 = sphi 0, %s45
      %s48 = sphi 0, %s47
      %s62 = sphi 0, %s48
      %s68 = sphi 0, %s70
      %s71 = sphi 0, %s68
      %s72 = sphi 0, %s71
      %s88 = sphi 0, %s72
      %s94 = sphi 0, %s96
      %s97 = sphi 0, %s94
      %s98 = sphi 0, %s97
      %s114 = sphi 0, %s98
      %s120 = sphi 0, %s122
      %s123 = sphi 0, %s120
      %s124 = sphi 0, %s123
      %s140 = sphi 0, %s124
    $region4: #{tpu_custom_call.1} parent=1 // loop_header_branch
      %14 = sbr.rel (%p12) target = $region8
    $region5: #{tpu_custom_call.1} parent=1 // loop_body
      %s16 = ssub.s32 %s11, 1
      %s17 = ssub.s32 %s11, 2
      %s18 = sadd.s32 %s11, 1
      %s19 = ssub.s32 %s11, %s18
      %p20 = scmp.eq.s32.totalorder %s19, 0
      %s22 = sadd.s32 %s21, 1
      %s23 = scalar_select %p20, %s21, %s22
      %p26 = pneg %p20
      %p27 = scmp.eq.s32.totalorder %s11, 2
      %p28 = por %p26, %p27
      %p29 = scmp.ne.s32.totalorder %s21, %s24
      %p30 = scmp.eq.s32.totalorder %s11, 0
      %p31 = por %p29, %p30
      %p32 = scmp.ne.s32.totalorder %s21, %s24
      %p33 = scmp.eq.s32.totalorder %s16, 2
      %p34 = por %p32, %p33
      %p35 = scmp.ne.s32.totalorder %s24, %s25
      %p36 = scmp.eq.s32.totalorder %s16, 0
      %p37 = por %p35, %p36
      %p38 = scmp.ne.s32.totalorder %s24, %s25
      %p39 = scmp.eq.s32.totalorder %s17, 2
      %p40 = por %p38, %p39
      %p42 = scmp.ne.s32.totalorder %s25, %s41
      %p43 = scmp.eq.s32.totalorder %s17, 0
      %p44 = por %p42, %p43
      %s46 = sadd.s32 %s45, 1
      %p49 = scmp.eq.s32.totalorder %s11, 2
      %p50 = scmp.ne.s32.totalorder %s45, %s47
      %p51 = scmp.eq.s32.totalorder %s11, 0
      %p52 = por %p50, %p51
      %p53 = scmp.ne.s32.totalorder %s45, %s47
      %p54 = scmp.eq.s32.totalorder %s16, 2
      %p55 = por %p53, %p54
      %p56 = scmp.ne.s32.totalorder %s47, %s48
      %p57 = scmp.eq.s32.totalorder %s16, 0
      %p58 = por %p56, %p57
      %p59 = scmp.ne.s32.totalorder %s47, %s48
      %p60 = scmp.eq.s32.totalorder %s17, 2
      %p61 = por %p59, %p60
      %p63 = scmp.ne.s32.totalorder %s48, %s62
      %p64 = scmp.eq.s32.totalorder %s17, 0
      %p65 = por %p63, %p64
      %s66 = ssub.s32 %s11, %s18
      %p67 = scmp.eq.s32.totalorder %s66, 0
      %s69 = sadd.s32 %s68, 1
      %s70 = scalar_select %p67, %s68, %s69
      %p73 = pneg %p67
      %p74 = scmp.eq.s32.totalorder %s11, 2
      %p75 = por %p73, %p74
      %p76 = scmp.ne.s32.totalorder %s68, %s71
      %p77 = scmp.eq.s32.totalorder %s11, 0
      %p78 = por %p76, %p77
      %p79 = scmp.ne.s32.totalorder %s68, %s71
      %p80 = scmp.eq.s32.totalorder %s16, 2
      %p81 = por %p79, %p80
      %p82 = scmp.ne.s32.totalorder %s71, %s72
      %p83 = scmp.eq.s32.totalorder %s16, 0
      %p84 = por %p82, %p83
      %p85 = scmp.ne.s32.totalorder %s71, %s72
      %p86 = scmp.eq.s32.totalorder %s17, 2
      %p87 = por %p85, %p86
      %p89 = scmp.ne.s32.totalorder %s72, %s88
      %p90 = scmp.eq.s32.totalorder %s17, 0
      %p91 = por %p89, %p90
      %s92 = ssub.s32 %s11, %s18
      %p93 = scmp.eq.s32.totalorder %s92, 0
      %s95 = sadd.s32 %s94, 1
      %s96 = scalar_select %p93, %s94, %s95
      %p99 = pneg %p93
      %p100 = scmp.eq.s32.totalorder %s11, 2
      %p101 = por %p99, %p100
      %p102 = scmp.ne.s32.totalorder %s94, %s97
      %p103 = scmp.eq.s32.totalorder %s11, 0
      %p104 = por %p102, %p103
      %p105 = scmp.ne.s32.totalorder %s94, %s97
      %p106 = scmp.eq.s32.totalorder %s16, 2
      %p107 = por %p105, %p106
      %p108 = scmp.ne.s32.totalorder %s97, %s98
      %p109 = scmp.eq.s32.totalorder %s16, 0
      %p110 = por %p108, %p109
      %p111 = scmp.ne.s32.totalorder %s97, %s98
      %p112 = scmp.eq.s32.totalorder %s17, 2
      %p113 = por %p111, %p112
      %p115 = scmp.ne.s32.totalorder %s98, %s114
      %p116 = scmp.eq.s32.totalorder %s17, 0
      %p117 = por %p115, %p116
      %s118 = ssub.s32 %s11, %s18
      %p119 = scmp.eq.s32.totalorder %s118, 0
      %s121 = sadd.s32 %s120, 1
      %s122 = scalar_select %p119, %s120, %s121
      %p125 = pneg %p119
      %p126 = scmp.eq.s32.totalorder %s11, 2
      %p127 = por %p125, %p126
      %p128 = scmp.ne.s32.totalorder %s120, %s123
      %p129 = scmp.eq.s32.totalorder %s11, 0
      %p130 = por %p128, %p129
      %p131 = scmp.ne.s32.totalorder %s120, %s123
      %p132 = scmp.eq.s32.totalorder %s16, 2
      %p133 = por %p131, %p132
      %p134 = scmp.ne.s32.totalorder %s123, %s124
      %p135 = scmp.eq.s32.totalorder %s16, 0
      %p136 = por %p134, %p135
      %p137 = scmp.ne.s32.totalorder %s123, %s124
      %p138 = scmp.eq.s32.totalorder %s17, 2
      %p139 = por %p137, %p138
      %p141 = scmp.ne.s32.totalorder %s124, %s140
      %p142 = scmp.eq.s32.totalorder %s17, 0
      %p143 = por %p141, %p142
      %p144 = scmp.le.s32.totalorder 1, %s11
      %p145 = scmp.lt.s32.totalorder %s11, 4
      %p146 = pnand %p144, %p145
      %p147 = pneg %p146
      // Predicated region
      $region9: #{tpu_custom_call.1} parent=5 // pred_check
        _
      $region10: #{tpu_custom_call.1} parent=5 // pred_check_branch
        %149 = sbr.rel (%p146) target = $region12
      $region11: #{tpu_custom_call.1} parent=5 // pred_region
        %s150 = ssub.s32 %s11, 1
        // Predicated region
        $region13: #{tpu_custom_call.1} parent=11 // pred_check
          %p151 = pneg %p58
        $region14: #{tpu_custom_call.1} parent=11 // pred_check_branch
          %153 = sbr.rel (%p151) target = $region16
        $region15: #{tpu_custom_call.1} parent=11 // pred_region
          _
        $region16: #{tpu_custom_call.1} parent=11 // pred_fallthru
          _
      $region12: #{tpu_custom_call.1} parent=5 // pred_fallthru
        _
      %p154 = scmp.lt.s32.totalorder %s11, 3
      // Predicated region
      $region17: #{tpu_custom_call.1} parent=5 // pred_check
        %p155 = pneg %p154
      $region18: #{tpu_custom_call.1} parent=5 // pred_check_branch
        %157 = sbr.rel (%p155) target = $region20
      $region19: #{tpu_custom_call.1} parent=5 // pred_region
        // Predicated region
        $region21: #{tpu_custom_call.1} parent=19 // pred_check
          %p158 = pneg %p31
        $region22: #{tpu_custom_call.1} parent=19 // pred_check_branch
          %160 = sbr.rel (%p158) target = $region24
        $region23: #{tpu_custom_call.1} parent=19 // pred_region
          %s161 = smul.u32 16, %s11
          %s162 = ssub.s32 38, %s161
          %p163 = scmp.lt.s32.totalorder %s162, 16
          %s164 = scalar_select %p163, %s162, 16
          %s165 = smul.u32 128, %s164
          %p166 = scmp.lt.s32.totalorder %s161, 37
          %s167 = scalar_select %p166, %s161, 37
          %s168 = smul.addr %s167, 8
          %s169 = scalar_lea.vmem %s0, %s168
          %s170 = smul.u32 16, %s11
          %s171 = ssub.s32 38, %s170
          %p172 = scmp.lt.s32.totalorder %s171, 16
          %s173 = scalar_select %p172, %s171, 16
          %s174 = smul.u32 128, %s173
        $region24: #{tpu_custom_call.1} parent=19 // pred_fallthru
          _
        // Predicated region
        $region25: #{tpu_custom_call.1} parent=19 // pred_check
          %p175 = pneg %p78
        $region26: #{tpu_custom_call.1} parent=19 // pred_check_branch
          %177 = sbr.rel (%p175) target = $region28
        $region27: #{tpu_custom_call.1} parent=19 // pred_region
          %s178 = smul.u32 16, %s11
          %s179 = ssub.s32 38, %s178
          %p180 = scmp.lt.s32.totalorder %s179, 16
          %s181 = scalar_select %p180, %s179, 16
          %s182 = smul.u32 128, %s181
          %p183 = scmp.lt.s32.totalorder %s178, 37
          %s184 = scalar_select %p183, %s178, 37
          %s185 = smul.addr %s184, 8
          %s186 = scalar_lea.vmem %s2, %s185
          %s187 = smul.u32 16, %s11
          %s188 = ssub.s32 38, %s187
          %p189 = scmp.lt.s32.totalorder %s188, 16
          %s190 = scalar_select %p189, %s188, 16
          %s191 = smul.u32 128, %s190
        $region28: #{tpu_custom_call.1} parent=19 // pred_fallthru
          _
      $region20: #{tpu_custom_call.1} parent=5 // pred_fallthru
        _
      %p192 = scmp.le.s32.totalorder 1, %s11
      %p193 = scmp.lt.s32.totalorder %s11, 4
      %p194 = pnand %p192, %p193
      %p195 = pneg %p194
      // Predicated region
      $region29: #{tpu_custom_call.1} parent=5 // pred_check
        _
      $region30: #{tpu_custom_call.1} parent=5 // pred_check_branch
        %197 = sbr.rel (%p194) target = $region32
      $region31: #{tpu_custom_call.1} parent=5 // pred_region
        %s198 = ssub.s32 %s11, 1
        %s199 = smul.u32 16, %s16
        %s200 = ssub.s32 38, %s199
        %p201 = scmp.lt.s32.totalorder %s200, 16
        %s202 = scalar_select %p201, %s200, 16
        %s203 = smul.u32 128, %s202
        %p204 = scmp.lt.s32.totalorder %s199, 37
        %s205 = scalar_select %p204, %s199, 37
        %s206 = smul.addr %s205, 8
        %s207 = scalar_lea.vmem %s0, %s206
        %p208 = pneg %p37
        %p209 = pneg %p34
        %p210 = pneg %p58
        %p211 = pneg %p55
        %s212 = smul.u32 16, %s16
        %s213 = ssub.s32 38, %s212
        %p214 = scmp.lt.s32.totalorder %s213, 16
        %s215 = scalar_select %p214, %s213, 16
        %s216 = smul.u32 128, %s215
        %p217 = scmp.lt.s32.totalorder %s212, 37
        %s218 = scalar_select %p217, %s212, 37
        %s219 = smul.addr %s218, 8
        %s220 = scalar_lea.vmem %s2, %s219
        %p221 = pneg %p84
        %p222 = pneg %p81
        %p223 = pneg %p110
        %p224 = pneg %p107
        %s225 = sand.u32 %s97, 1
        %s226 = sand.u32 %s97, 1
        %s227 = smul.addr %s226, 128
        %s228 = scalar_lea.vmem [#allocation2], %s227
        %p229 = pneg %p136
        %p230 = pneg %p133
        %s231 = sand.u32 %s123, 1
        %s232 = sand.u32 %s123, 1
        %s233 = smul.addr %s232, 32
        %s234 = scalar_lea.vmem [#allocation3], %s233
        %s235 = smul.u32 16, %s16
        %s236 = ssub.s32 38, %s235
        %p237 = scmp.lt.s32.totalorder %s236, 16
        %s238 = scalar_select %p237, %s236, 16
        %s239 = smul.u32 128, %s238
        %p240 = scmp.lt.s32.totalorder %s235, 37
        %s241 = scalar_select %p240, %s235, 37
        %s242 = smul.addr %s241, 8
        %s243 = scalar_lea.vmem %s0, %s242
        %s244 = smul.u32 16, %s16
        %s245 = ssub.s32 38, %s244
        %p246 = scmp.lt.s32.totalorder %s245, 16
        %s247 = scalar_select %p246, %s245, 16
        %s248 = smul.u32 128, %s247
        %s249 = smul.u32 16, %s16
        %s250 = ssub.s32 38, %s249
        %p251 = scmp.lt.s32.totalorder %s250, 16
        %s252 = scalar_select %p251, %s250, 16
        %s253 = smul.u32 128, %s252
        %p254 = scmp.lt.s32.totalorder %s249, 37
        %s255 = scalar_select %p254, %s249, 37
        %s256 = smul.addr %s255, 8
        %s257 = scalar_lea.vmem %s2, %s256
        %s258 = smul.u32 16, %s16
        %s259 = ssub.s32 38, %s258
        %p260 = scmp.lt.s32.totalorder %s259, 16
        %s261 = scalar_select %p260, %s259, 16
        %s262 = smul.u32 128, %s261
        %s263 = smul.u32 16, %s16
        %s264 = ssub.s32 38, %s263
        %p265 = scmp.lt.s32.totalorder %s264, 16
        %s266 = scalar_select %p265, %s264, 16
        %s267 = smul.u32 128, %s266
        %s268 = smul.u32 16, %s16
        %s269 = ssub.s32 38, %s268
        %p270 = scmp.lt.s32.totalorder %s269, 16
        %s271 = scalar_select %p270, %s269, 16
        %s272 = smul.u32 32, %s271
        %v275 = vld [vmem:[%s243] sm:$0xff]
        %v276 = vld [vmem:[%s243 + $0x8] sm:$0xff]
        %v277 = vld [vmem:[%s243 + $0x10] sm:$0xff]
        %v278 = vld [vmem:[%s243 + $0x18] sm:$0xff]
        %v279 = vld [vmem:[%s243 + $0x20] sm:$0xff]
        %v280 = vld [vmem:[%s243 + $0x28] sm:$0xff]
        %v281 = vld [vmem:[%s243 + $0x30] sm:$0xff]
        %v282 = vld [vmem:[%s243 + $0x38] sm:$0xff]
        %v283 = vld [vmem:[%s243 + $0x40] sm:$0xff]
        %v284 = vld [vmem:[%s243 + $0x48] sm:$0xff]
        %v285 = vld [vmem:[%s243 + $0x50] sm:$0xff]
        %v286 = vld [vmem:[%s243 + $0x58] sm:$0xff]
        %v287 = vld [vmem:[%s243 + $0x60] sm:$0xff]
        %v288 = vld [vmem:[%s243 + $0x68] sm:$0xff]
        %v289 = vld [vmem:[%s243 + $0x70] sm:$0xff]
        %v290 = vld [vmem:[%s243 + $0x78] sm:$0xff]
        %v291 = vld [vmem:[%s1] sm:$0xff]
        %v292 = vld [vmem:[%s1 + $0x8] sm:$0xff]
        %v293 = vld [vmem:[%s1 + $0x10] sm:$0xff]
        %v294 = vld [vmem:[%s1 + $0x18] sm:$0xff]
        %v295 = vld [vmem:[%s1 + $0x20] sm:$0xff]
        %v296 = vld [vmem:[%s1 + $0x28] sm:$0xff]
        %v297 = vld [vmem:[%s1 + $0x30] sm:$0xff]
        %v298 = vld [vmem:[%s1 + $0x38] sm:$0xff]
        %v299 = vld [vmem:[%s1 + $0x40] sm:$0xff]
        %v300 = vld [vmem:[%s1 + $0x48] sm:$0xff]
        %v301 = vld [vmem:[%s1 + $0x50] sm:$0xff]
        %v302 = vld [vmem:[%s1 + $0x58] sm:$0xff]
        %v303 = vld [vmem:[%s1 + $0x60] sm:$0xff]
        %v304 = vld [vmem:[%s1 + $0x68] sm:$0xff]
        %v305 = vld [vmem:[%s1 + $0x70] sm:$0xff]
        %v306 = vld [vmem:[%s1 + $0x78] sm:$0xff]
        %307 = vmatprep.subr.mxu0 0.0
        %308 = vmatpush1.msra.mxu0 %v291
        %309 = vmatprep.subr.mxu0 0.0
        %310 = vmatpush1.msra.mxu0 %v292
        %311 = vmatprep.subr.mxu0 0.0
        %312 = vmatpush1.msra.mxu0 %v293
        %313 = vmatprep.subr.mxu0 0.0
        %314 = vmatpush1.msra.mxu0 %v294
        %315 = vmatprep.subr.mxu0 0.0
        %316 = vmatpush1.msra.mxu0 %v295
        %317 = vmatprep.subr.mxu0 0.0
        %318 = vmatpush1.msra.mxu0 %v296
        %319 = vmatprep.subr.mxu0 0.0
        %320 = vmatpush1.msra.mxu0 %v297
        %321 = vmatprep.subr.mxu0 0.0
        %322 = vmatpush1.msra.mxu0 %v298
        %323 = vmatprep.subr.mxu0 0.0
        %324 = vmatpush1.msra.mxu0 %v299
        %325 = vmatprep.subr.mxu0 0.0
        %326 = vmatpush1.msra.mxu0 %v300
        %327 = vmatprep.subr.mxu0 0.0
        %328 = vmatpush1.msra.mxu0 %v301
        %329 = vmatprep.subr.mxu0 0.0
        %330 = vmatpush1.msra.mxu0 %v302
        %331 = vmatprep.subr.mxu0 0.0
        %332 = vmatpush1.msra.mxu0 %v303
        %333 = vmatprep.subr.mxu0 0.0
        %334 = vmatpush1.msra.mxu0 %v304
        %335 = vmatprep.subr.mxu0 0.0
        %336 = vmatpush1.msra.mxu0 %v305
        %337 = vmatprep.subr.mxu0 0.0
        %338 = vmatpush1.msra.mxu0 %v306
        %339 = vmatprep.subr.mxu0 0.0
        %340 = vmatpush1.msra.mxu0 0.0
        %341 = vmatprep.subr.mxu0 0.0
        %342 = vmatpush1.msra.mxu0 0.0
        %343 = vmatprep.subr.mxu0 0.0
        %344 = vmatpush1.msra.mxu0 0.0
        %345 = vmatprep.subr.mxu0 0.0
        %346 = vmatpush1.msra.mxu0 0.0
        %347 = vmatprep.subr.mxu0 0.0
        %348 = vmatpush1.msra.mxu0 0.0
        %349 = vmatprep.subr.mxu0 0.0
        %350 = vmatpush1.msra.mxu0 0.0
        %351 = vmatprep.subr.mxu0 0.0
        %352 = vmatpush1.msra.mxu0 0.0
        %353 = vmatprep.subr.mxu0 0.0
        %354 = vmatpush1.msra.mxu0 0.0
        %355 = vmatprep.subr.mxu0 0.0
        %356 = vmatpush1.msra.mxu0 0.0
        %357 = vmatprep.subr.mxu0 0.0
        %358 = vmatpush1.msra.mxu0 0.0
        %359 = vmatprep.subr.mxu0 0.0
        %360 = vmatpush1.msra.mxu0 0.0
        %361 = vmatprep.subr.mxu0 0.0
        %362 = vmatpush1.msra.mxu0 0.0
        %363 = vmatprep.subr.mxu0 0.0
        %364 = vmatpush1.msra.mxu0 0.0
        %365 = vmatprep.subr.mxu0 0.0
        %366 = vmatpush1.msra.mxu0 0.0
        %367 = vmatprep.subr.mxu0 0.0
        %368 = vmatpush1.msra.mxu0 0.0
        %369 = vmatprep.subr.mxu0 0.0
        %370 = vmatpush1.msra.mxu0 0.0
        %371 = vmatprep.mubr.f32.mxu0 0.0
        %372 = vmatmul.mubr.f32.gmra.mrb[0].mxu0 %v275
        %v373 = vpop.f32.mrb[0].mxu0
        %v374 = vadd.f32 0.0, %v373
        %v375 = vpop.f32.mrb[0].mxu0
        %376 = vmatprep.mubr.f32.mxu0 0.0
        %377 = vmatmul.mubr.f32.gmra.mrb[0].mxu0 %v276
        %v378 = vpop.f32.mrb[0].mxu0
        %v379 = vadd.f32 0.0, %v378
        %v380 = vpop.f32.mrb[0].mxu0
        %381 = vmatprep.mubr.f32.mxu0 0.0
        %382 = vmatmul.mubr.f32.gmra.mrb[0].mxu0 %v277
        %v383 = vpop.f32.mrb[0].mxu0
        %v384 = vadd.f32 0.0, %v383
        %v385 = vpop.f32.mrb[0].mxu0
        %386 = vmatprep.mubr.f32.mxu0 0.0
        %387 = vmatmul.mubr.f32.gmra.mrb[0].mxu0 %v278
        %v388 = vpop.f32.mrb[0].mxu0
        %v389 = vadd.f32 0.0, %v388
        %v390 = vpop.f32.mrb[0].mxu0
        %391 = vmatprep.mubr.f32.mxu0 0.0
        %392 = vmatmul.mubr.f32.gmra.mrb[0].mxu0 %v279
        %v393 = vpop.f32.mrb[0].mxu0
        %v394 = vadd.f32 0.0, %v393
        %v395 = vpop.f32.mrb[0].mxu0
        %396 = vmatprep.mubr.f32.mxu0 0.0
        %397 = vmatmul.mubr.f32.gmra.mrb[0].mxu0 %v280
        %v398 = vpop.f32.mrb[0].mxu0
        %v399 = vadd.f32 0.0, %v398
        %v400 = vpop.f32.mrb[0].mxu0
        %401 = vmatprep.mubr.f32.mxu0 0.0
        %402 = vmatmul.mubr.f32.gmra.mrb[0].mxu0 %v281
        %v403 = vpop.f32.mrb[0].mxu0
        %v404 = vadd.f32 0.0, %v403
        %v405 = vpop.f32.mrb[0].mxu0
        %406 = vmatprep.mubr.f32.mxu0 0.0
        %407 = vmatmul.mubr.f32.gmra.mrb[0].mxu0 %v282
        %v408 = vpop.f32.mrb[0].mxu0
        %v409 = vadd.f32 0.0, %v408
        %v410 = vpop.f32.mrb[0].mxu0
        %411 = vmatprep.mubr.f32.mxu0 0.0
        %412 = vmatmul.mubr.f32.gmra.mrb[0].mxu0 %v283
        %v413 = vpop.f32.mrb[0].mxu0
        %v414 = vadd.f32 0.0, %v413
        %v415 = vpop.f32.mrb[0].mxu0
        %416 = vmatprep.mubr.f32.mxu0 0.0
        %417 = vmatmul.mubr.f32.gmra.mrb[0].mxu0 %v284
        %v418 = vpop.f32.mrb[0].mxu0
        %v419 = vadd.f32 0.0, %v418
        %v420 = vpop.f32.mrb[0].mxu0
        %421 = vmatprep.mubr.f32.mxu0 0.0
        %422 = vmatmul.mubr.f32.gmra.mrb[0].mxu0 %v285
        %v423 = vpop.f32.mrb[0].mxu0
        %v424 = vadd.f32 0.0, %v423
        %v425 = vpop.f32.mrb[0].mxu0
        %426 = vmatprep.mubr.f32.mxu0 0.0
        %427 = vmatmul.mubr.f32.gmra.mrb[0].mxu0 %v286
        %v428 = vpop.f32.mrb[0].mxu0
        %v429 = vadd.f32 0.0, %v428
        %v430 = vpop.f32.mrb[0].mxu0
        %431 = vmatprep.mubr.f32.mxu0 0.0
        %432 = vmatmul.mubr.f32.gmra.mrb[0].mxu0 %v287
        %v433 = vpop.f32.mrb[0].mxu0
        %v434 = vadd.f32 0.0, %v433
        %v435 = vpop.f32.mrb[0].mxu0
        %436 = vmatprep.mubr.f32.mxu0 0.0
        %437 = vmatmul.mubr.f32.gmra.mrb[0].mxu0 %v288
        %v438 = vpop.f32.mrb[0].mxu0
        %v439 = vadd.f32 0.0, %v438
        %v440 = vpop.f32.mrb[0].mxu0
        %441 = vmatprep.mubr.f32.mxu0 0.0
        %442 = vmatmul.mubr.f32.gmra.mrb[0].mxu0 %v289
        %v443 = vpop.f32.mrb[0].mxu0
        %v444 = vadd.f32 0.0, %v443
        %v445 = vpop.f32.mrb[0].mxu0
        %446 = vmatprep.mubr.f32.mxu0 0.0
        %447 = vmatmul.mubr.f32.gmra.mrb[0].mxu0 %v290
        %v448 = vpop.f32.mrb[0].mxu0
        %v449 = vadd.f32 0.0, %v448
        %v450 = vpop.f32.mrb[0].mxu0
        %451 = vdwg.mxu0
        %vm452 = vcmp.gt.f32.partialorder %v374, 0.0
        %vm453 = vcmp.gt.f32.partialorder %v379, 0.0
        %vm454 = vcmp.gt.f32.partialorder %v384, 0.0
        %vm455 = vcmp.gt.f32.partialorder %v389, 0.0
        %vm456 = vcmp.gt.f32.partialorder %v394, 0.0
        %vm457 = vcmp.gt.f32.partialorder %v399, 0.0
        %vm458 = vcmp.gt.f32.partialorder %v404, 0.0
        %vm459 = vcmp.gt.f32.partialorder %v409, 0.0
        %vm460 = vcmp.gt.f32.partialorder %v414, 0.0
        %vm461 = vcmp.gt.f32.partialorder %v419, 0.0
        %vm462 = vcmp.gt.f32.partialorder %v424, 0.0
        %vm463 = vcmp.gt.f32.partialorder %v429, 0.0
        %vm464 = vcmp.gt.f32.partialorder %v434, 0.0
        %vm465 = vcmp.gt.f32.partialorder %v439, 0.0
        %vm466 = vcmp.gt.f32.partialorder %v444, 0.0
        %vm467 = vcmp.gt.f32.partialorder %v449, 0.0
        %v468 = vld [vmem:[%s257] sm:$0xff]
        %v469 = vld [vmem:[%s257 + $0x8] sm:$0xff]
        %v470 = vld [vmem:[%s257 + $0x10] sm:$0xff]
        %v471 = vld [vmem:[%s257 + $0x18] sm:$0xff]
        %v472 = vld [vmem:[%s257 + $0x20] sm:$0xff]
        %v473 = vld [vmem:[%s257 + $0x28] sm:$0xff]
        %v474 = vld [vmem:[%s257 + $0x30] sm:$0xff]
        %v475 = vld [vmem:[%s257 + $0x38] sm:$0xff]
        %v476 = vld [vmem:[%s257 + $0x40] sm:$0xff]
        %v477 = vld [vmem:[%s257 + $0x48] sm:$0xff]
        %v478 = vld [vmem:[%s257 + $0x50] sm:$0xff]
        %v479 = vld [vmem:[%s257 + $0x58] sm:$0xff]
        %v480 = vld [vmem:[%s257 + $0x60] sm:$0xff]
        %v481 = vld [vmem:[%s257 + $0x68] sm:$0xff]
        %v482 = vld [vmem:[%s257 + $0x70] sm:$0xff]
        %v483 = vld [vmem:[%s257 + $0x78] sm:$0xff]
        %vm484 = vcmp.ne.s32.totalorder %v468, 0
        %vm485 = vcmp.ne.s32.totalorder %v469, 0
        %vm486 = vcmp.ne.s32.totalorder %v470, 0
        %vm487 = vcmp.ne.s32.totalorder %v471, 0
        %vm488 = vcmp.ne.s32.totalorder %v472, 0
        %vm489 = vcmp.ne.s32.totalorder %v473, 0
        %vm490 = vcmp.ne.s32.totalorder %v474, 0
        %vm491 = vcmp.ne.s32.totalorder %v475, 0
        %vm492 = vcmp.ne.s32.totalorder %v476, 0
        %vm493 = vcmp.ne.s32.totalorder %v477, 0
        %vm494 = vcmp.ne.s32.totalorder %v478, 0
        %vm495 = vcmp.ne.s32.totalorder %v479, 0
        %vm496 = vcmp.ne.s32.totalorder %v480, 0
        %vm497 = vcmp.ne.s32.totalorder %v481, 0
        %vm498 = vcmp.ne.s32.totalorder %v482, 0
        %vm499 = vcmp.ne.s32.totalorder %v483, 0
        %vm500 = vmxor %vm452, %vm484
        %vm501 = vmxor %vm453, %vm485
        %vm502 = vmxor %vm454, %vm486
        %vm503 = vmxor %vm455, %vm487
        %vm504 = vmxor %vm456, %vm488
        %vm505 = vmxor %vm457, %vm489
        %vm506 = vmxor %vm458, %vm490
        %vm507 = vmxor %vm459, %vm491
        %vm508 = vmxor %vm460, %vm492
        %vm509 = vmxor %vm461, %vm493
        %vm510 = vmxor %vm462, %vm494
        %vm511 = vmxor %vm463, %vm495
        %vm512 = vmxor %vm464, %vm496
        %vm513 = vmxor %vm465, %vm497
        %vm514 = vmxor %vm466, %vm498
        %vm515 = vmxor %vm467, %vm499
        %v516 = vsel %vm484, 1, 0
        %v517 = vsel %vm485, 1, 0
        %v518 = vsel %vm486, 1, 0
        %v519 = vsel %vm487, 1, 0
        %v520 = vsel %vm488, 1, 0
        %v521 = vsel %vm489, 1, 0
        %v522 = vsel %vm490, 1, 0
        %v523 = vsel %vm491, 1, 0
        %v524 = vsel %vm492, 1, 0
        %v525 = vsel %vm493, 1, 0
        %v526 = vsel %vm494, 1, 0
        %v527 = vsel %vm495, 1, 0
        %v528 = vsel %vm496, 1, 0
        %v529 = vsel %vm497, 1, 0
        %v530 = vsel %vm498, 1, 0
        %v531 = vsel %vm499, 1, 0
        %532 = vrot.lane.b32.xlu0 %v516, 1
        %v533 = vpop.permute.xlu0 %532
        %534 = vrot.lane.b32.xlu0 %v517, 1
        %v535 = vpop.permute.xlu0 %534
        %536 = vrot.lane.b32.xlu0 %v518, 1
        %v537 = vpop.permute.xlu0 %536
        %538 = vrot.lane.b32.xlu0 %v519, 1
        %v539 = vpop.permute.xlu0 %538
        %540 = vrot.lane.b32.xlu0 %v520, 1
        %v541 = vpop.permute.xlu0 %540
        %542 = vrot.lane.b32.xlu0 %v521, 1
        %v543 = vpop.permute.xlu0 %542
        %544 = vrot.lane.b32.xlu0 %v522, 1
        %v545 = vpop.permute.xlu0 %544
        %546 = vrot.lane.b32.xlu0 %v523, 1
        %v547 = vpop.permute.xlu0 %546
        %548 = vrot.lane.b32.xlu0 %v524, 1
        %v549 = vpop.permute.xlu0 %548
        %550 = vrot.lane.b32.xlu0 %v525, 1
        %v551 = vpop.permute.xlu0 %550
        %552 = vrot.lane.b32.xlu0 %v526, 1
        %v553 = vpop.permute.xlu0 %552
        %554 = vrot.lane.b32.xlu0 %v527, 1
        %v555 = vpop.permute.xlu0 %554
        %556 = vrot.lane.b32.xlu0 %v528, 1
        %v557 = vpop.permute.xlu0 %556
        %558 = vrot.lane.b32.xlu0 %v529, 1
        %v559 = vpop.permute.xlu0 %558
        %560 = vrot.lane.b32.xlu0 %v530, 1
        %v561 = vpop.permute.xlu0 %560
        %562 = vrot.lane.b32.xlu0 %v531, 1
        %v563 = vpop.permute.xlu0 %562
        %vm564 = vcmp.ne.s32.totalorder %v533, 0
        %vm565 = vcmp.ne.s32.totalorder %v535, 0
        %vm566 = vcmp.ne.s32.totalorder %v537, 0
        %vm567 = vcmp.ne.s32.totalorder %v539, 0
        %vm568 = vcmp.ne.s32.totalorder %v541, 0
        %vm569 = vcmp.ne.s32.totalorder %v543, 0
        %vm570 = vcmp.ne.s32.totalorder %v545, 0
        %vm571 = vcmp.ne.s32.totalorder %v547, 0
        %vm572 = vcmp.ne.s32.totalorder %v549, 0
        %vm573 = vcmp.ne.s32.totalorder %v551, 0
        %vm574 = vcmp.ne.s32.totalorder %v553, 0
        %vm575 = vcmp.ne.s32.totalorder %v555, 0
        %vm576 = vcmp.ne.s32.totalorder %v557, 0
        %vm577 = vcmp.ne.s32.totalorder %v559, 0
        %vm578 = vcmp.ne.s32.totalorder %v561, 0
        %vm579 = vcmp.ne.s32.totalorder %v563, 0
        %vm580 = vmxor %vm452, %vm564
        %vm581 = vmxor %vm453, %vm565
        %vm582 = vmxor %vm454, %vm566
        %vm583 = vmxor %vm455, %vm567
        %vm584 = vmxor %vm456, %vm568
        %vm585 = vmxor %vm457, %vm569
        %vm586 = vmxor %vm458, %vm570
        %vm587 = vmxor %vm459, %vm571
        %vm588 = vmxor %vm460, %vm572
        %vm589 = vmxor %vm461, %vm573
        %vm590 = vmxor %vm462, %vm574
        %vm591 = vmxor %vm463, %vm575
        %vm592 = vmxor %vm464, %vm576
        %vm593 = vmxor %vm465, %vm577
        %vm594 = vmxor %vm466, %vm578
        %vm595 = vmxor %vm467, %vm579
        %vm596 = vmxor %vm580, 1
        %vm597 = vmxor %vm581, 1
        %vm598 = vmxor %vm582, 1
        %vm599 = vmxor %vm583, 1
        %vm600 = vmxor %vm584, 1
        %vm601 = vmxor %vm585, 1
        %vm602 = vmxor %vm586, 1
        %vm603 = vmxor %vm587, 1
        %vm604 = vmxor %vm588, 1
        %vm605 = vmxor %vm589, 1
        %vm606 = vmxor %vm590, 1
        %vm607 = vmxor %vm591, 1
        %vm608 = vmxor %vm592, 1
        %vm609 = vmxor %vm593, 1
        %vm610 = vmxor %vm594, 1
        %vm611 = vmxor %vm595, 1
        %v612 = vsel %vm596, 1, 0
        %v613 = vsel %vm597, 1, 0
        %v614 = vsel %vm598, 1, 0
        %v615 = vsel %vm599, 1, 0
        %v616 = vsel %vm600, 1, 0
        %v617 = vsel %vm601, 1, 0
        %v618 = vsel %vm602, 1, 0
        %v619 = vsel %vm603, 1, 0
        %v620 = vsel %vm604, 1, 0
        %v621 = vsel %vm605, 1, 0
        %v622 = vsel %vm606, 1, 0
        %v623 = vsel %vm607, 1, 0
        %v624 = vsel %vm608, 1, 0
        %v625 = vsel %vm609, 1, 0
        %v626 = vsel %vm610, 1, 0
        %v627 = vsel %vm611, 1, 0
        %628 = vrot.lane.b32.xlu0 %v612, 127
        %v629 = vpop.permute.xlu0 %628
        %630 = vrot.lane.b32.xlu0 %v613, 127
        %v631 = vpop.permute.xlu0 %630
        %632 = vrot.lane.b32.xlu0 %v614, 127
        %v633 = vpop.permute.xlu0 %632
        %634 = vrot.lane.b32.xlu0 %v615, 127
        %v635 = vpop.permute.xlu0 %634
        %636 = vrot.lane.b32.xlu0 %v616, 127
        %v637 = vpop.permute.xlu0 %636
        %638 = vrot.lane.b32.xlu0 %v617, 127
        %v639 = vpop.permute.xlu0 %638
        %640 = vrot.lane.b32.xlu0 %v618, 127
        %v641 = vpop.permute.xlu0 %640
        %642 = vrot.lane.b32.xlu0 %v619, 127
        %v643 = vpop.permute.xlu0 %642
        %644 = vrot.lane.b32.xlu0 %v620, 127
        %v645 = vpop.permute.xlu0 %644
        %646 = vrot.lane.b32.xlu0 %v621, 127
        %v647 = vpop.permute.xlu0 %646
        %648 = vrot.lane.b32.xlu0 %v622, 127
        %v649 = vpop.permute.xlu0 %648
        %650 = vrot.lane.b32.xlu0 %v623, 127
        %v651 = vpop.permute.xlu0 %650
        %652 = vrot.lane.b32.xlu0 %v624, 127
        %v653 = vpop.permute.xlu0 %652
        %654 = vrot.lane.b32.xlu0 %v625, 127
        %v655 = vpop.permute.xlu0 %654
        %656 = vrot.lane.b32.xlu0 %v626, 127
        %v657 = vpop.permute.xlu0 %656
        %658 = vrot.lane.b32.xlu0 %v627, 127
        %v659 = vpop.permute.xlu0 %658
        %vm660 = vcmp.ne.s32.totalorder %v629, 0
        %vm661 = vcmp.ne.s32.totalorder %v631, 0
        %vm662 = vcmp.ne.s32.totalorder %v633, 0
        %vm663 = vcmp.ne.s32.totalorder %v635, 0
        %vm664 = vcmp.ne.s32.totalorder %v637, 0
        %vm665 = vcmp.ne.s32.totalorder %v639, 0
        %vm666 = vcmp.ne.s32.totalorder %v641, 0
        %vm667 = vcmp.ne.s32.totalorder %v643, 0
        %vm668 = vcmp.ne.s32.totalorder %v645, 0
        %vm669 = vcmp.ne.s32.totalorder %v647, 0
        %vm670 = vcmp.ne.s32.totalorder %v649, 0
        %vm671 = vcmp.ne.s32.totalorder %v651, 0
        %vm672 = vcmp.ne.s32.totalorder %v653, 0
        %vm673 = vcmp.ne.s32.totalorder %v655, 0
        %vm674 = vcmp.ne.s32.totalorder %v657, 0
        %vm675 = vcmp.ne.s32.totalorder %v659, 0
        %vm676 = vmand %vm500, %vm660
        %vm677 = vmand %vm501, %vm661
        %vm678 = vmand %vm502, %vm662
        %vm679 = vmand %vm503, %vm663
        %vm680 = vmand %vm504, %vm664
        %vm681 = vmand %vm505, %vm665
        %vm682 = vmand %vm506, %vm666
        %vm683 = vmand %vm507, %vm667
        %vm684 = vmand %vm508, %vm668
        %vm685 = vmand %vm509, %vm669
        %vm686 = vmand %vm510, %vm670
        %vm687 = vmand %vm511, %vm671
        %vm688 = vmand %vm512, %vm672
        %vm689 = vmand %vm513, %vm673
        %vm690 = vmand %vm514, %vm674
        %vm691 = vmand %vm515, %vm675
        %708 = vrot.lane.b32.xlu0 %v374, 127
        %v709 = vpop.permute.xlu0 %708
        %710 = vrot.lane.b32.xlu0 %v379, 127
        %v711 = vpop.permute.xlu0 %710
        %712 = vrot.lane.b32.xlu0 %v384, 127
        %v713 = vpop.permute.xlu0 %712
        %714 = vrot.lane.b32.xlu0 %v389, 127
        %v715 = vpop.permute.xlu0 %714
        %716 = vrot.lane.b32.xlu0 %v394, 127
        %v717 = vpop.permute.xlu0 %716
        %718 = vrot.lane.b32.xlu0 %v399, 127
        %v719 = vpop.permute.xlu0 %718
        %720 = vrot.lane.b32.xlu0 %v404, 127
        %v721 = vpop.permute.xlu0 %720
        %722 = vrot.lane.b32.xlu0 %v409, 127
        %v723 = vpop.permute.xlu0 %722
        %724 = vrot.lane.b32.xlu0 %v414, 127
        %v725 = vpop.permute.xlu0 %724
        %726 = vrot.lane.b32.xlu0 %v419, 127
        %v727 = vpop.permute.xlu0 %726
        %728 = vrot.lane.b32.xlu0 %v424, 127
        %v729 = vpop.permute.xlu0 %728
        %730 = vrot.lane.b32.xlu0 %v429, 127
        %v731 = vpop.permute.xlu0 %730
        %732 = vrot.lane.b32.xlu0 %v434, 127
        %v733 = vpop.permute.xlu0 %732
        %734 = vrot.lane.b32.xlu0 %v439, 127
        %v735 = vpop.permute.xlu0 %734
        %736 = vrot.lane.b32.xlu0 %v444, 127
        %v737 = vpop.permute.xlu0 %736
        %738 = vrot.lane.b32.xlu0 %v449, 127
        %v739 = vpop.permute.xlu0 %738
        %v756 = vsel %vm676, %v709, %v374
        %v757 = vsel %vm677, %v711, %v379
        %v758 = vsel %vm678, %v713, %v384
        %v759 = vsel %vm679, %v715, %v389
        %v760 = vsel %vm680, %v717, %v394
        %v761 = vsel %vm681, %v719, %v399
        %v762 = vsel %vm682, %v721, %v404
        %v763 = vsel %vm683, %v723, %v409
        %v764 = vsel %vm684, %v725, %v414
        %v765 = vsel %vm685, %v727, %v419
        %v766 = vsel %vm686, %v729, %v424
        %v767 = vsel %vm687, %v731, %v429
        %v768 = vsel %vm688, %v733, %v434
        %v769 = vsel %vm689, %v735, %v439
        %v770 = vsel %vm690, %v737, %v444
        %v771 = vsel %vm691, %v739, %v449
        %v772 = vxor.u32 %v756, 2147483648
        %v773 = vxor.u32 %v757, 2147483648
        %v774 = vxor.u32 %v758, 2147483648
        %v775 = vxor.u32 %v759, 2147483648
        %v776 = vxor.u32 %v760, 2147483648
        %v777 = vxor.u32 %v761, 2147483648
        %v778 = vxor.u32 %v762, 2147483648
        %v779 = vxor.u32 %v763, 2147483648
        %v780 = vxor.u32 %v764, 2147483648
        %v781 = vxor.u32 %v765, 2147483648
        %v782 = vxor.u32 %v766, 2147483648
        %v783 = vxor.u32 %v767, 2147483648
        %v784 = vxor.u32 %v768, 2147483648
        %v785 = vxor.u32 %v769, 2147483648
        %v786 = vxor.u32 %v770, 2147483648
        %v787 = vxor.u32 %v771, 2147483648
        %v788 = vmul.f32 %v772, 1.442695
        %v789 = vpow.pop %v788
        %v790 = vmul.f32 %v773, 1.442695
        %v791 = vpow.pop %v790
        %v792 = vmul.f32 %v774, 1.442695
        %v793 = vpow.pop %v792
        %v794 = vmul.f32 %v775, 1.442695
        %v795 = vpow.pop %v794
        %v796 = vmul.f32 %v776, 1.442695
        %v797 = vpow.pop %v796
        %v798 = vmul.f32 %v777, 1.442695
        %v799 = vpow.pop %v798
        %v800 = vmul.f32 %v778, 1.442695
        %v801 = vpow.pop %v800
        %v802 = vmul.f32 %v779, 1.442695
        %v803 = vpow.pop %v802
        %v804 = vmul.f32 %v780, 1.442695
        %v805 = vpow.pop %v804
        %v806 = vmul.f32 %v781, 1.442695
        %v807 = vpow.pop %v806
        %v808 = vmul.f32 %v782, 1.442695
        %v809 = vpow.pop %v808
        %v810 = vmul.f32 %v783, 1.442695
        %v811 = vpow.pop %v810
        %v812 = vmul.f32 %v784, 1.442695
        %v813 = vpow.pop %v812
        %v814 = vmul.f32 %v785, 1.442695
        %v815 = vpow.pop %v814
        %v816 = vmul.f32 %v786, 1.442695
        %v817 = vpow.pop %v816
        %v818 = vmul.f32 %v787, 1.442695
        %v819 = vpow.pop %v818
        %v820 = vadd.f32 %v789, 1.0
        %v821 = vadd.f32 %v791, 1.0
        %v822 = vadd.f32 %v793, 1.0
        %v823 = vadd.f32 %v795, 1.0
        %v824 = vadd.f32 %v797, 1.0
        %v825 = vadd.f32 %v799, 1.0
        %v826 = vadd.f32 %v801, 1.0
        %v827 = vadd.f32 %v803, 1.0
        %v828 = vadd.f32 %v805, 1.0
        %v829 = vadd.f32 %v807, 1.0
        %v830 = vadd.f32 %v809, 1.0
        %v831 = vadd.f32 %v811, 1.0
        %v832 = vadd.f32 %v813, 1.0
        %v833 = vadd.f32 %v815, 1.0
        %v834 = vadd.f32 %v817, 1.0
        %v835 = vadd.f32 %v819, 1.0
        %v836 = vrcp.pop %v820
        %v837 = vmul.f32 1.0, %v836
        %v838 = vrcp.pop %v821
        %v839 = vmul.f32 1.0, %v838
        %v840 = vrcp.pop %v822
        %v841 = vmul.f32 1.0, %v840
        %v842 = vrcp.pop %v823
        %v843 = vmul.f32 1.0, %v842
        %v844 = vrcp.pop %v824
        %v845 = vmul.f32 1.0, %v844
        %v846 = vrcp.pop %v825
        %v847 = vmul.f32 1.0, %v846
        %v848 = vrcp.pop %v826
        %v849 = vmul.f32 1.0, %v848
        %v850 = vrcp.pop %v827
        %v851 = vmul.f32 1.0, %v850
        %v852 = vrcp.pop %v828
        %v853 = vmul.f32 1.0, %v852
        %v854 = vrcp.pop %v829
        %v855 = vmul.f32 1.0, %v854
        %v856 = vrcp.pop %v830
        %v857 = vmul.f32 1.0, %v856
        %v858 = vrcp.pop %v831
        %v859 = vmul.f32 1.0, %v858
        %v860 = vrcp.pop %v832
        %v861 = vmul.f32 1.0, %v860
        %v862 = vrcp.pop %v833
        %v863 = vmul.f32 1.0, %v862
        %v864 = vrcp.pop %v834
        %v865 = vmul.f32 1.0, %v864
        %v866 = vrcp.pop %v835
        %v867 = vmul.f32 1.0, %v866
        %vm868 = vcmask 7168
        %869 = vst.msk [vmem:[%s228] sm:$0xff] %vm868, %v837
        %870 = vst.msk [vmem:[%s228 + $0x8] sm:$0xff] %vm868, %v839
        %871 = vst.msk [vmem:[%s228 + $0x10] sm:$0xff] %vm868, %v841
        %872 = vst.msk [vmem:[%s228 + $0x18] sm:$0xff] %vm868, %v843
        %873 = vst.msk [vmem:[%s228 + $0x20] sm:$0xff] %vm868, %v845
        %874 = vst.msk [vmem:[%s228 + $0x28] sm:$0xff] %vm868, %v847
        %875 = vst.msk [vmem:[%s228 + $0x30] sm:$0xff] %vm868, %v849
        %876 = vst.msk [vmem:[%s228 + $0x38] sm:$0xff] %vm868, %v851
        %877 = vst.msk [vmem:[%s228 + $0x40] sm:$0xff] %vm868, %v853
        %878 = vst.msk [vmem:[%s228 + $0x48] sm:$0xff] %vm868, %v855
        %879 = vst.msk [vmem:[%s228 + $0x50] sm:$0xff] %vm868, %v857
        %880 = vst.msk [vmem:[%s228 + $0x58] sm:$0xff] %vm868, %v859
        %881 = vst.msk [vmem:[%s228 + $0x60] sm:$0xff] %vm868, %v861
        %882 = vst.msk [vmem:[%s228 + $0x68] sm:$0xff] %vm868, %v863
        %883 = vst.msk [vmem:[%s228 + $0x70] sm:$0xff] %vm868, %v865
        %884 = vst.msk [vmem:[%s228 + $0x78] sm:$0xff] %vm868, %v867
        %vm885 = vmpackc.low %vm677, %vm676
        %vm886 = vmpackc.low %vm679, %vm678
        %vm887 = vmpackc.even %vm886, %vm885
        %vm888 = vmpackc.low %vm681, %vm680
        %vm889 = vmpackc.low %vm683, %vm682
        %vm890 = vmpackc.even %vm889, %vm888
        %vm891 = vmpackc.low %vm685, %vm684
        %vm892 = vmpackc.low %vm687, %vm686
        %vm893 = vmpackc.even %vm892, %vm891
        %vm894 = vmpackc.low %vm689, %vm688
        %vm895 = vmpackc.low %vm691, %vm690
        %vm896 = vmpackc.even %vm895, %vm894
        %v897 = vsel %vm887, 16843009, 0
        %v898 = vsel %vm890, 16843009, 0
        %v899 = vsel %vm893, 16843009, 0
        %v900 = vsel %vm896, 16843009, 0
        %v901 = vunpack.c.0.s8 %v897
        %v902 = vunpack.c.1.s8 %v897
        %v903 = vunpack.c.2.s8 %v897
        %v904 = vunpack.c.3.s8 %v897
        %v905 = vunpack.c.0.s8 %v898
        %v906 = vunpack.c.1.s8 %v898
        %v907 = vunpack.c.2.s8 %v898
        %v908 = vunpack.c.3.s8 %v898
        %v909 = vunpack.c.0.s8 %v899
        %v910 = vunpack.c.1.s8 %v899
        %v911 = vunpack.c.2.s8 %v899
        %v912 = vunpack.c.3.s8 %v899
        %v913 = vunpack.c.0.s8 %v900
        %v914 = vunpack.c.1.s8 %v900
        %v915 = vunpack.c.2.s8 %v900
        %v916 = vunpack.c.3.s8 %v900
        %v917 = vpack.c.b16 %v901, %v901
        %v918 = vpack.c.b8 %v917, %v917
        %v919 = vpack.c.b16 %v902, %v902
        %v920 = vpack.c.b8 %v919, %v919
        %v921 = vpack.c.b16 %v903, %v903
        %v922 = vpack.c.b8 %v921, %v921
        %v923 = vpack.c.b16 %v904, %v904
        %v924 = vpack.c.b8 %v923, %v923
        %v925 = vpack.c.b16 %v905, %v905
        %v926 = vpack.c.b8 %v925, %v925
        %v927 = vpack.c.b16 %v906, %v906
        %v928 = vpack.c.b8 %v927, %v927
        %v929 = vpack.c.b16 %v907, %v907
        %v930 = vpack.c.b8 %v929, %v929
        %v931 = vpack.c.b16 %v908, %v908
        %v932 = vpack.c.b8 %v931, %v931
        %v933 = vpack.c.b16 %v909, %v909
        %v934 = vpack.c.b8 %v933, %v933
        %v935 = vpack.c.b16 %v910, %v910
        %v936 = vpack.c.b8 %v935, %v935
        %v937 = vpack.c.b16 %v911, %v911
        %v938 = vpack.c.b8 %v937, %v937
        %v939 = vpack.c.b16 %v912, %v912
        %v940 = vpack.c.b8 %v939, %v939
        %v941 = vpack.c.b16 %v913, %v913
        %v942 = vpack.c.b8 %v941, %v941
        %v943 = vpack.c.b16 %v914, %v914
        %v944 = vpack.c.b8 %v943, %v943
        %v945 = vpack.c.b16 %v915, %v915
        %v946 = vpack.c.b8 %v945, %v945
        %v947 = vpack.c.b16 %v916, %v916
        %v948 = vpack.c.b8 %v947, %v947
        %vm949 = vcmask 1024
        %950 = vst.msk [vmem:[%s234] sm:$0x3] %vm949, %v918
        %951 = vst.msk [vmem:[%s234 + $0x2] sm:$0x3] %vm949, %v920
        %952 = vst.msk [vmem:[%s234 + $0x4] sm:$0x3] %vm949, %v922
        %953 = vst.msk [vmem:[%s234 + $0x6] sm:$0x3] %vm949, %v924
        %954 = vst.msk [vmem:[%s234 + $0x8] sm:$0x3] %vm949, %v926
        %955 = vst.msk [vmem:[%s234 + $0xa] sm:$0x3] %vm949, %v928
        %956 = vst.msk [vmem:[%s234 + $0xc] sm:$0x3] %vm949, %v930
        %957 = vst.msk [vmem:[%s234 + $0xe] sm:$0x3] %vm949, %v932
        %958 = vst.msk [vmem:[%s234 + $0x10] sm:$0x3] %vm949, %v934
        %959 = vst.msk [vmem:[%s234 + $0x12] sm:$0x3] %vm949, %v936
        %960 = vst.msk [vmem:[%s234 + $0x14] sm:$0x3] %vm949, %v938
        %961 = vst.msk [vmem:[%s234 + $0x16] sm:$0x3] %vm949, %v940
        %962 = vst.msk [vmem:[%s234 + $0x18] sm:$0x3] %vm949, %v942
        %963 = vst.msk [vmem:[%s234 + $0x1a] sm:$0x3] %vm949, %v944
        %964 = vst.msk [vmem:[%s234 + $0x1c] sm:$0x3] %vm949, %v946
        %965 = vst.msk [vmem:[%s234 + $0x1e] sm:$0x3] %vm949, %v948
        %s966 = sand.u32 %s97, 1
        %s967 = sand.u32 %s97, 1
        %s968 = smul.addr %s967, 128
        %s969 = scalar_lea.vmem [#allocation2], %s968
        %s970 = sand.u32 %s123, 1
        %s971 = sand.u32 %s123, 1
        %s972 = smul.addr %s971, 32
        %s973 = scalar_lea.vmem [#allocation3], %s972
        // Predicated region
        $region33: #{tpu_custom_call.1} parent=31 // pred_check
          %p974 = pneg %p107
        $region34: #{tpu_custom_call.1} parent=31 // pred_check_branch
          %976 = sbr.rel (%p974) target = $region36
        $region35: #{tpu_custom_call.1} parent=31 // pred_region
          %s977 = smul.u32 16, %s16
          %s978 = ssub.s32 38, %s977
          %p979 = scmp.lt.s32.totalorder %s978, 16
          %s980 = scalar_select %p979, %s978, 16
          %s981 = smul.u32 128, %s980
          %p982 = scmp.ne.s32.totalorder 0, %s981
          %s983 = smul.addr %s977, 8
          %s984 = scalar_lea.vmem %s3, %s983
          // Predicated region
          $region37: #{tpu_custom_call.1} parent=35 // pred_check
            %p985 = pneg %p982
          $region38: #{tpu_custom_call.1} parent=35 // pred_check_branch
            %987 = sbr.rel (%p985) target = $region40
          $region39: #{tpu_custom_call.1} parent=35 // pred_region
            // Predicated region
            $region41: #{tpu_custom_call.1} parent=39 // pred_check
              _
            $region42: #{tpu_custom_call.1} parent=39 // pred_check_branch
              %989 = sbr.rel (0) target = $region44
            $region43: #{tpu_custom_call.1} parent=39 // pred_region
              // Predicated region
              $region63: #{tpu_custom_call.1} parent=43 // pred_check
                _
              $region64: #{tpu_custom_call.1} parent=43 // pred_check_branch
                %1068 = sbr.rel (0) target = $region66
              $region65: #{tpu_custom_call.1} parent=43 // pred_region
                %s1069 = sshrl.u32 %s980, 4
                // While loop
                $region67: #{tpu_custom_call.1} parent=65 // loop_pre_header
                  _
                $region68: #{tpu_custom_call.1} parent=65 // loop_header
                  %s1071 = sphi 0, %s1073
                  %p1072 = scmp.ge.s32.totalorder %s1071, %s1069
                  %s1076 = sphi 0, %s1113
                  %s1077 = sphi %s969, %s1116
                  %s1078 = sphi %s984, %s1117
                $region69: #{tpu_custom_call.1} parent=65 // loop_header_branch
                  %1075 = sbr.rel (%p1072) target = $region73
                $region70: #{tpu_custom_call.1} parent=65 // loop_body
                  %v1079 = vld [vmem:[%s1077] sm:$0xff]
                  %1080 = vst [vmem:[%s1078] sm:$0xff] %v1079
                  %v1081 = vld [vmem:[%s1077 + $0x8] sm:$0xff]
                  %1082 = vst [vmem:[%s1078 + $0x8] sm:$0xff] %v1081
                  %v1083 = vld [vmem:[%s1077 + $0x10] sm:$0xff]
                  %1084 = vst [vmem:[%s1078 + $0x10] sm:$0xff] %v1083
                  %v1085 = vld [vmem:[%s1077 + $0x18] sm:$0xff]
                  %1086 = vst [vmem:[%s1078 + $0x18] sm:$0xff] %v1085
                  %v1087 = vld [vmem:[%s1077 + $0x20] sm:$0xff]
                  %1088 = vst [vmem:[%s1078 + $0x20] sm:$0xff] %v1087
                  %v1089 = vld [vmem:[%s1077 + $0x28] sm:$0xff]
                  %1090 = vst [vmem:[%s1078 + $0x28] sm:$0xff] %v1089
                  %v1091 = vld [vmem:[%s1077 + $0x30] sm:$0xff]
                  %1092 = vst [vmem:[%s1078 + $0x30] sm:$0xff] %v1091
                  %v1093 = vld [vmem:[%s1077 + $0x38] sm:$0xff]
                  %1094 = vst [vmem:[%s1078 + $0x38] sm:$0xff] %v1093
                  %v1095 = vld [vmem:[%s1077 + $0x40] sm:$0xff]
                  %1096 = vst [vmem:[%s1078 + $0x40] sm:$0xff] %v1095
                  %v1097 = vld [vmem:[%s1077 + $0x48] sm:$0xff]
                  %1098 = vst [vmem:[%s1078 + $0x48] sm:$0xff] %v1097
                  %v1099 = vld [vmem:[%s1077 + $0x50] sm:$0xff]
                  %1100 = vst [vmem:[%s1078 + $0x50] sm:$0xff] %v1099
                  %v1101 = vld [vmem:[%s1077 + $0x58] sm:$0xff]
                  %1102 = vst [vmem:[%s1078 + $0x58] sm:$0xff] %v1101
                  %v1103 = vld [vmem:[%s1077 + $0x60] sm:$0xff]
                  %1104 = vst [vmem:[%s1078 + $0x60] sm:$0xff] %v1103
                  %v1105 = vld [vmem:[%s1077 + $0x68] sm:$0xff]
                  %1106 = vst [vmem:[%s1078 + $0x68] sm:$0xff] %v1105
                  %v1107 = vld [vmem:[%s1077 + $0x70] sm:$0xff]
                  %1108 = vst [vmem:[%s1078 + $0x70] sm:$0xff] %v1107
                  %v1109 = vld [vmem:[%s1077 + $0x78] sm:$0xff]
                  %1110 = vst [vmem:[%s1078 + $0x78] sm:$0xff] %v1109
                  %s1111 = sadd.s32 1, %s1076
                  %p1112 = scmp.ge.s32.totalorder %s1111, %s1069
                  %s1113 = scalar_select %p1112, 0, %s1111
                  %s1114 = smul.u32 %s1113, 128
                  %s1115 = smul.u32 %s1113, 128
                  %s1116 = scalar_lea.vmem %s969, %s1114 [#allocation2]
                  %s1117 = scalar_lea.vmem %s984, %s1115
                $region71: #{tpu_custom_call.1} parent=65 // loop_footer
                  %s1073 = sadd.s32 %s1071, 1
                $region72: #{tpu_custom_call.1} parent=65 // loop_footer_branch
                  %1070 = sbr.rel target = $region68
                $region73: #{tpu_custom_call.1} parent=65 // loop_exit
                  _
                %s1118 = sshrl.u32 %s980, 4
                %s1119 = sand.u32 %s980, 15
                %s1120 = smul.u32 %s1118, 16
                %s1121 = smul.u32 8, %s1120
                %s1122 = scalar_lea.vmem %s969, %s1121 [#allocation2]
                %s1123 = smul.u32 8, %s1120
                %s1124 = scalar_lea.vmem %s984, %s1123
                // While loop
                $region74: #{tpu_custom_call.1} parent=65 // loop_pre_header
                  _
                $region75: #{tpu_custom_call.1} parent=65 // loop_header
                  %s1126 = sphi 0, %s1128
                  %p1127 = scmp.ge.s32.totalorder %s1126, %s1119
                  %s1131 = sphi 0, %s1138
                  %s1132 = sphi %s1122, %s1141
                  %s1133 = sphi %s1124, %s1142
                $region76: #{tpu_custom_call.1} parent=65 // loop_header_branch
                  %1130 = sbr.rel (%p1127) target = $region80
                $region77: #{tpu_custom_call.1} parent=65 // loop_body
                  %v1134 = vld [vmem:[%s1132] sm:$0xff]
                  %1135 = vst [vmem:[%s1133] sm:$0xff] %v1134
                  %s1136 = sadd.s32 1, %s1131
                  %p1137 = scmp.ge.s32.totalorder %s1136, %s1119
                  %s1138 = scalar_select %p1137, 0, %s1136
                  %s1139 = smul.u32 %s1138, 8
                  %s1140 = smul.u32 %s1138, 8
                  %s1141 = scalar_lea.vmem %s1122, %s1139 [#allocation2]
                  %s1142 = scalar_lea.vmem %s1124, %s1140
                $region78: #{tpu_custom_call.1} parent=65 // loop_footer
                  %s1128 = sadd.s32 %s1126, 1
                $region79: #{tpu_custom_call.1} parent=65 // loop_footer_branch
                  %1125 = sbr.rel target = $region75
                $region80: #{tpu_custom_call.1} parent=65 // loop_exit
                  _
              $region66: #{tpu_custom_call.1} parent=43 // pred_fallthru
                _
              // Predicated region
              $region81: #{tpu_custom_call.1} parent=43 // pred_check
                _
              $region82: #{tpu_custom_call.1} parent=43 // pred_check_branch
                %1144 = sbr.rel target = $region84
              $region83: #{tpu_custom_call.1} parent=43 // pred_region
                _
              $region84: #{tpu_custom_call.1} parent=43 // pred_fallthru
                _
            $region44: #{tpu_custom_call.1} parent=39 // pred_fallthru
              _
            // Predicated region
            $region45: #{tpu_custom_call.1} parent=39 // pred_check
              _
            $region46: #{tpu_custom_call.1} parent=39 // pred_check_branch
              %991 = sbr.rel target = $region48
            $region47: #{tpu_custom_call.1} parent=39 // pred_region
              %s993 = sshrl.u32 %s980, 4
              // While loop
              $region49: #{tpu_custom_call.1} parent=47 // loop_pre_header
                _
              $region50: #{tpu_custom_call.1} parent=47 // loop_header
                %s995 = sphi 0, %s997
                %p996 = scmp.ge.s32.totalorder %s995, %s993
                %s1000 = sphi 0, %s1037
                %s1001 = sphi %s969, %s1040
                %s1002 = sphi %s984, %s1041
              $region51: #{tpu_custom_call.1} parent=47 // loop_header_branch
                %999 = sbr.rel (%p996) target = $region55
              $region52: #{tpu_custom_call.1} parent=47 // loop_body
                %v1003 = vld [vmem:[%s1001] sm:$0xff]
                %1004 = vst [vmem:[%s1002] sm:$0xff] %v1003
                %v1005 = vld [vmem:[%s1001 + $0x8] sm:$0xff]
                %1006 = vst [vmem:[%s1002 + $0x8] sm:$0xff] %v1005
                %v1007 = vld [vmem:[%s1001 + $0x10] sm:$0xff]
                %1008 = vst [vmem:[%s1002 + $0x10] sm:$0xff] %v1007
                %v1009 = vld [vmem:[%s1001 + $0x18] sm:$0xff]
                %1010 = vst [vmem:[%s1002 + $0x18] sm:$0xff] %v1009
                %v1011 = vld [vmem:[%s1001 + $0x20] sm:$0xff]
                %1012 = vst [vmem:[%s1002 + $0x20] sm:$0xff] %v1011
                %v1013 = vld [vmem:[%s1001 + $0x28] sm:$0xff]
                %1014 = vst [vmem:[%s1002 + $0x28] sm:$0xff] %v1013
                %v1015 = vld [vmem:[%s1001 + $0x30] sm:$0xff]
                %1016 = vst [vmem:[%s1002 + $0x30] sm:$0xff] %v1015
                %v1017 = vld [vmem:[%s1001 + $0x38] sm:$0xff]
                %1018 = vst [vmem:[%s1002 + $0x38] sm:$0xff] %v1017
                %v1019 = vld [vmem:[%s1001 + $0x40] sm:$0xff]
                %1020 = vst [vmem:[%s1002 + $0x40] sm:$0xff] %v1019
                %v1021 = vld [vmem:[%s1001 + $0x48] sm:$0xff]
                %1022 = vst [vmem:[%s1002 + $0x48] sm:$0xff] %v1021
                %v1023 = vld [vmem:[%s1001 + $0x50] sm:$0xff]
                %1024 = vst [vmem:[%s1002 + $0x50] sm:$0xff] %v1023
                %v1025 = vld [vmem:[%s1001 + $0x58] sm:$0xff]
                %1026 = vst [vmem:[%s1002 + $0x58] sm:$0xff] %v1025
                %v1027 = vld [vmem:[%s1001 + $0x60] sm:$0xff]
                %1028 = vst [vmem:[%s1002 + $0x60] sm:$0xff] %v1027
                %v1029 = vld [vmem:[%s1001 + $0x68] sm:$0xff]
                %1030 = vst [vmem:[%s1002 + $0x68] sm:$0xff] %v1029
                %v1031 = vld [vmem:[%s1001 + $0x70] sm:$0xff]
                %1032 = vst [vmem:[%s1002 + $0x70] sm:$0xff] %v1031
                %v1033 = vld [vmem:[%s1001 + $0x78] sm:$0xff]
                %1034 = vst [vmem:[%s1002 + $0x78] sm:$0xff] %v1033
                %s1035 = sadd.s32 1, %s1000
                %p1036 = scmp.ge.s32.totalorder %s1035, %s993
                %s1037 = scalar_select %p1036, 0, %s1035
                %s1038 = smul.u32 %s1037, 128
                %s1039 = smul.u32 %s1037, 128
                %s1040 = scalar_lea.vmem %s969, %s1038 [#allocation2]
                %s1041 = scalar_lea.vmem %s984, %s1039
              $region53: #{tpu_custom_call.1} parent=47 // loop_footer
                %s997 = sadd.s32 %s995, 1
              $region54: #{tpu_custom_call.1} parent=47 // loop_footer_branch
                %994 = sbr.rel target = $region50
              $region55: #{tpu_custom_call.1} parent=47 // loop_exit
                _
              %s1042 = sshrl.u32 %s980, 4
              %s1043 = sand.u32 %s980, 15
              %s1044 = smul.u32 %s1042, 16
              %s1045 = smul.u32 8, %s1044
              %s1046 = scalar_lea.vmem %s969, %s1045 [#allocation2]
              %s1047 = smul.u32 8, %s1044
              %s1048 = scalar_lea.vmem %s984, %s1047
              // While loop
              $region56: #{tpu_custom_call.1} parent=47 // loop_pre_header
                _
              $region57: #{tpu_custom_call.1} parent=47 // loop_header
                %s1050 = sphi 0, %s1052
                %p1051 = scmp.ge.s32.totalorder %s1050, %s1043
                %s1055 = sphi 0, %s1062
                %s1056 = sphi %s1046, %s1065
                %s1057 = sphi %s1048, %s1066
              $region58: #{tpu_custom_call.1} parent=47 // loop_header_branch
                %1054 = sbr.rel (%p1051) target = $region62
              $region59: #{tpu_custom_call.1} parent=47 // loop_body
                %v1058 = vld [vmem:[%s1056] sm:$0xff]
                %1059 = vst [vmem:[%s1057] sm:$0xff] %v1058
                %s1060 = sadd.s32 1, %s1055
                %p1061 = scmp.ge.s32.totalorder %s1060, %s1043
                %s1062 = scalar_select %p1061, 0, %s1060
                %s1063 = smul.u32 %s1062, 8
                %s1064 = smul.u32 %s1062, 8
                %s1065 = scalar_lea.vmem %s1046, %s1063 [#allocation2]
                %s1066 = scalar_lea.vmem %s1048, %s1064
              $region60: #{tpu_custom_call.1} parent=47 // loop_footer
                %s1052 = sadd.s32 %s1050, 1
              $region61: #{tpu_custom_call.1} parent=47 // loop_footer_branch
                %1049 = sbr.rel target = $region57
              $region62: #{tpu_custom_call.1} parent=47 // loop_exit
                _
            $region48: #{tpu_custom_call.1} parent=39 // pred_fallthru
              _
          $region40: #{tpu_custom_call.1} parent=35 // pred_fallthru
            _
          %1145 = vnop
        $region36: #{tpu_custom_call.1} parent=31 // pred_fallthru
          _
        // Predicated region
        $region85: #{tpu_custom_call.1} parent=31 // pred_check
          %p1146 = pneg %p133
        $region86: #{tpu_custom_call.1} parent=31 // pred_check_branch
          %1148 = sbr.rel (%p1146) target = $region88
        $region87: #{tpu_custom_call.1} parent=31 // pred_region
          %s1149 = smul.u32 16, %s16
          %s1150 = ssub.s32 38, %s1149
          %p1151 = scmp.lt.s32.totalorder %s1150, 16
          %s1152 = scalar_select %p1151, %s1150, 16
          %s1153 = smul.u32 32, %s1152
          %p1154 = scmp.ne.s32.totalorder 0, %s1153
          %s1155 = smul.addr %s1149, 2
          %s1156 = scalar_lea.vmem %s4, %s1155
          // Predicated region
          $region89: #{tpu_custom_call.1} parent=87 // pred_check
            %p1157 = pneg %p1154
          $region90: #{tpu_custom_call.1} parent=87 // pred_check_branch
            %1159 = sbr.rel (%p1157) target = $region92
          $region91: #{tpu_custom_call.1} parent=87 // pred_region
            // Predicated region
            $region93: #{tpu_custom_call.1} parent=91 // pred_check
              _
            $region94: #{tpu_custom_call.1} parent=91 // pred_check_branch
              %1161 = sbr.rel target = $region96
            $region95: #{tpu_custom_call.1} parent=91 // pred_region
              // Predicated region
              $region115: #{tpu_custom_call.1} parent=95 // pred_check
                _
              $region116: #{tpu_custom_call.1} parent=95 // pred_check_branch
                %1240 = sbr.rel (0) target = $region118
              $region117: #{tpu_custom_call.1} parent=95 // pred_region
                %s1242 = sshrl.u32 %s1152, 4
                // While loop
                $region119: #{tpu_custom_call.1} parent=117 // loop_pre_header
                  _
                $region120: #{tpu_custom_call.1} parent=117 // loop_header
                  %s1244 = sphi 0, %s1246
                  %p1245 = scmp.ge.s32.totalorder %s1244, %s1242
                  %s1249 = sphi 0, %s1286
                  %s1250 = sphi %s973, %s1289
                  %s1251 = sphi %s1156, %s1290
                $region121: #{tpu_custom_call.1} parent=117 // loop_header_branch
                  %1248 = sbr.rel (%p1245) target = $region125
                $region122: #{tpu_custom_call.1} parent=117 // loop_body
                  %v1252 = vld [vmem:[%s1250] sm:$0x3]
                  %1253 = vst [vmem:[%s1251] sm:$0x3] %v1252
                  %v1254 = vld [vmem:[%s1250 + $0x2] sm:$0x3]
                  %1255 = vst [vmem:[%s1251 + $0x2] sm:$0x3] %v1254
                  %v1256 = vld [vmem:[%s1250 + $0x4] sm:$0x3]
                  %1257 = vst [vmem:[%s1251 + $0x4] sm:$0x3] %v1256
                  %v1258 = vld [vmem:[%s1250 + $0x6] sm:$0x3]
                  %1259 = vst [vmem:[%s1251 + $0x6] sm:$0x3] %v1258
                  %v1260 = vld [vmem:[%s1250 + $0x8] sm:$0x3]
                  %1261 = vst [vmem:[%s1251 + $0x8] sm:$0x3] %v1260
                  %v1262 = vld [vmem:[%s1250 + $0xa] sm:$0x3]
                  %1263 = vst [vmem:[%s1251 + $0xa] sm:$0x3] %v1262
                  %v1264 = vld [vmem:[%s1250 + $0xc] sm:$0x3]
                  %1265 = vst [vmem:[%s1251 + $0xc] sm:$0x3] %v1264
                  %v1266 = vld [vmem:[%s1250 + $0xe] sm:$0x3]
                  %1267 = vst [vmem:[%s1251 + $0xe] sm:$0x3] %v1266
                  %v1268 = vld [vmem:[%s1250 + $0x10] sm:$0x3]
                  %1269 = vst [vmem:[%s1251 + $0x10] sm:$0x3] %v1268
                  %v1270 = vld [vmem:[%s1250 + $0x12] sm:$0x3]
                  %1271 = vst [vmem:[%s1251 + $0x12] sm:$0x3] %v1270
                  %v1272 = vld [vmem:[%s1250 + $0x14] sm:$0x3]
                  %1273 = vst [vmem:[%s1251 + $0x14] sm:$0x3] %v1272
                  %v1274 = vld [vmem:[%s1250 + $0x16] sm:$0x3]
                  %1275 = vst [vmem:[%s1251 + $0x16] sm:$0x3] %v1274
                  %v1276 = vld [vmem:[%s1250 + $0x18] sm:$0x3]
                  %1277 = vst [vmem:[%s1251 + $0x18] sm:$0x3] %v1276
                  %v1278 = vld [vmem:[%s1250 + $0x1a] sm:$0x3]
                  %1279 = vst [vmem:[%s1251 + $0x1a] sm:$0x3] %v1278
                  %v1280 = vld [vmem:[%s1250 + $0x1c] sm:$0x3]
                  %1281 = vst [vmem:[%s1251 + $0x1c] sm:$0x3] %v1280
                  %v1282 = vld [vmem:[%s1250 + $0x1e] sm:$0x3]
                  %1283 = vst [vmem:[%s1251 + $0x1e] sm:$0x3] %v1282
                  %s1284 = sadd.s32 1, %s1249
                  %p1285 = scmp.ge.s32.totalorder %s1284, %s1242
                  %s1286 = scalar_select %p1285, 0, %s1284
                  %s1287 = smul.u32 %s1286, 32
                  %s1288 = smul.u32 %s1286, 32
                  %s1289 = scalar_lea.vmem %s973, %s1287 [#allocation3]
                  %s1290 = scalar_lea.vmem %s1156, %s1288
                $region123: #{tpu_custom_call.1} parent=117 // loop_footer
                  %s1246 = sadd.s32 %s1244, 1
                $region124: #{tpu_custom_call.1} parent=117 // loop_footer_branch
                  %1243 = sbr.rel target = $region120
                $region125: #{tpu_custom_call.1} parent=117 // loop_exit
                  _
                %s1291 = sshrl.u32 %s1152, 4
                %s1292 = sand.u32 %s1152, 15
                %s1293 = smul.u32 %s1291, 16
                %s1294 = smul.u32 2, %s1293
                %s1295 = scalar_lea.vmem %s973, %s1294 [#allocation3]
                %s1296 = smul.u32 2, %s1293
                %s1297 = scalar_lea.vmem %s1156, %s1296
                // While loop
                $region126: #{tpu_custom_call.1} parent=117 // loop_pre_header
                  _
                $region127: #{tpu_custom_call.1} parent=117 // loop_header
                  %s1299 = sphi 0, %s1301
                  %p1300 = scmp.ge.s32.totalorder %s1299, %s1292
                  %s1304 = sphi 0, %s1311
                  %s1305 = sphi %s1295, %s1314
                  %s1306 = sphi %s1297, %s1315
                $region128: #{tpu_custom_call.1} parent=117 // loop_header_branch
                  %1303 = sbr.rel (%p1300) target = $region132
                $region129: #{tpu_custom_call.1} parent=117 // loop_body
                  %v1307 = vld [vmem:[%s1305] sm:$0x3]
                  %1308 = vst [vmem:[%s1306] sm:$0x3] %v1307
                  %s1309 = sadd.s32 1, %s1304
                  %p1310 = scmp.ge.s32.totalorder %s1309, %s1292
                  %s1311 = scalar_select %p1310, 0, %s1309
                  %s1312 = smul.u32 %s1311, 2
                  %s1313 = smul.u32 %s1311, 2
                  %s1314 = scalar_lea.vmem %s1295, %s1312 [#allocation3]
                  %s1315 = scalar_lea.vmem %s1297, %s1313
                $region130: #{tpu_custom_call.1} parent=117 // loop_footer
                  %s1301 = sadd.s32 %s1299, 1
                $region131: #{tpu_custom_call.1} parent=117 // loop_footer_branch
                  %1298 = sbr.rel target = $region127
                $region132: #{tpu_custom_call.1} parent=117 // loop_exit
                  _
              $region118: #{tpu_custom_call.1} parent=95 // pred_fallthru
                _
            $region96: #{tpu_custom_call.1} parent=91 // pred_fallthru
              _
            // Predicated region
            $region97: #{tpu_custom_call.1} parent=91 // pred_check
              _
            $region98: #{tpu_custom_call.1} parent=91 // pred_check_branch
              %1163 = sbr.rel (0) target = $region100
            $region99: #{tpu_custom_call.1} parent=91 // pred_region
              %s1165 = sshrl.u32 %s1152, 4
              // While loop
              $region101: #{tpu_custom_call.1} parent=99 // loop_pre_header
                _
              $region102: #{tpu_custom_call.1} parent=99 // loop_header
                %s1167 = sphi 0, %s1169
                %p1168 = scmp.ge.s32.totalorder %s1167, %s1165
                %s1172 = sphi 0, %s1209
                %s1173 = sphi %s973, %s1212
                %s1174 = sphi %s1156, %s1213
              $region103: #{tpu_custom_call.1} parent=99 // loop_header_branch
                %1171 = sbr.rel (%p1168) target = $region107
              $region104: #{tpu_custom_call.1} parent=99 // loop_body
                %v1175 = vld [vmem:[%s1173] sm:$0x3]
                %1176 = vst [vmem:[%s1174] sm:$0x3] %v1175
                %v1177 = vld [vmem:[%s1173 + $0x2] sm:$0x3]
                %1178 = vst [vmem:[%s1174 + $0x2] sm:$0x3] %v1177
                %v1179 = vld [vmem:[%s1173 + $0x4] sm:$0x3]
                %1180 = vst [vmem:[%s1174 + $0x4] sm:$0x3] %v1179
                %v1181 = vld [vmem:[%s1173 + $0x6] sm:$0x3]
                %1182 = vst [vmem:[%s1174 + $0x6] sm:$0x3] %v1181
                %v1183 = vld [vmem:[%s1173 + $0x8] sm:$0x3]
                %1184 = vst [vmem:[%s1174 + $0x8] sm:$0x3] %v1183
                %v1185 = vld [vmem:[%s1173 + $0xa] sm:$0x3]
                %1186 = vst [vmem:[%s1174 + $0xa] sm:$0x3] %v1185
                %v1187 = vld [vmem:[%s1173 + $0xc] sm:$0x3]
                %1188 = vst [vmem:[%s1174 + $0xc] sm:$0x3] %v1187
                %v1189 = vld [vmem:[%s1173 + $0xe] sm:$0x3]
                %1190 = vst [vmem:[%s1174 + $0xe] sm:$0x3] %v1189
                %v1191 = vld [vmem:[%s1173 + $0x10] sm:$0x3]
                %1192 = vst [vmem:[%s1174 + $0x10] sm:$0x3] %v1191
                %v1193 = vld [vmem:[%s1173 + $0x12] sm:$0x3]
                %1194 = vst [vmem:[%s1174 + $0x12] sm:$0x3] %v1193
                %v1195 = vld [vmem:[%s1173 + $0x14] sm:$0x3]
                %1196 = vst [vmem:[%s1174 + $0x14] sm:$0x3] %v1195
                %v1197 = vld [vmem:[%s1173 + $0x16] sm:$0x3]
                %1198 = vst [vmem:[%s1174 + $0x16] sm:$0x3] %v1197
                %v1199 = vld [vmem:[%s1173 + $0x18] sm:$0x3]
                %1200 = vst [vmem:[%s1174 + $0x18] sm:$0x3] %v1199
                %v1201 = vld [vmem:[%s1173 + $0x1a] sm:$0x3]
                %1202 = vst [vmem:[%s1174 + $0x1a] sm:$0x3] %v1201
                %v1203 = vld [vmem:[%s1173 + $0x1c] sm:$0x3]
                %1204 = vst [vmem:[%s1174 + $0x1c] sm:$0x3] %v1203
                %v1205 = vld [vmem:[%s1173 + $0x1e] sm:$0x3]
                %1206 = vst [vmem:[%s1174 + $0x1e] sm:$0x3] %v1205
                %s1207 = sadd.s32 1, %s1172
                %p1208 = scmp.ge.s32.totalorder %s1207, %s1165
                %s1209 = scalar_select %p1208, 0, %s1207
                %s1210 = smul.u32 %s1209, 32
                %s1211 = smul.u32 %s1209, 32
                %s1212 = scalar_lea.vmem %s973, %s1210 [#allocation3]
                %s1213 = scalar_lea.vmem %s1156, %s1211
              $region105: #{tpu_custom_call.1} parent=99 // loop_footer
                %s1169 = sadd.s32 %s1167, 1
              $region106: #{tpu_custom_call.1} parent=99 // loop_footer_branch
                %1166 = sbr.rel target = $region102
              $region107: #{tpu_custom_call.1} parent=99 // loop_exit
                _
              %s1214 = sshrl.u32 %s1152, 4
              %s1215 = sand.u32 %s1152, 15
              %s1216 = smul.u32 %s1214, 16
              %s1217 = smul.u32 2, %s1216
              %s1218 = scalar_lea.vmem %s973, %s1217 [#allocation3]
              %s1219 = smul.u32 2, %s1216
              %s1220 = scalar_lea.vmem %s1156, %s1219
              // While loop
              $region108: #{tpu_custom_call.1} parent=99 // loop_pre_header
                _
              $region109: #{tpu_custom_call.1} parent=99 // loop_header
                %s1222 = sphi 0, %s1224
                %p1223 = scmp.ge.s32.totalorder %s1222, %s1215
                %s1227 = sphi 0, %s1234
                %s1228 = sphi %s1218, %s1237
                %s1229 = sphi %s1220, %s1238
              $region110: #{tpu_custom_call.1} parent=99 // loop_header_branch
                %1226 = sbr.rel (%p1223) target = $region114
              $region111: #{tpu_custom_call.1} parent=99 // loop_body
                %v1230 = vld [vmem:[%s1228] sm:$0x3]
                %1231 = vst [vmem:[%s1229] sm:$0x3] %v1230
                %s1232 = sadd.s32 1, %s1227
                %p1233 = scmp.ge.s32.totalorder %s1232, %s1215
                %s1234 = scalar_select %p1233, 0, %s1232
                %s1235 = smul.u32 %s1234, 2
                %s1236 = smul.u32 %s1234, 2
                %s1237 = scalar_lea.vmem %s1218, %s1235 [#allocation3]
                %s1238 = scalar_lea.vmem %s1220, %s1236
              $region112: #{tpu_custom_call.1} parent=99 // loop_footer
                %s1224 = sadd.s32 %s1222, 1
              $region113: #{tpu_custom_call.1} parent=99 // loop_footer_branch
                %1221 = sbr.rel target = $region109
              $region114: #{tpu_custom_call.1} parent=99 // loop_exit
                _
            $region100: #{tpu_custom_call.1} parent=91 // pred_fallthru
              _
          $region92: #{tpu_custom_call.1} parent=87 // pred_fallthru
            _
          %1316 = vnop
        $region88: #{tpu_custom_call.1} parent=31 // pred_fallthru
          _
      $region32: #{tpu_custom_call.1} parent=5 // pred_fallthru
        _
      %p1317 = scmp.le.s32.totalorder 2, %s11
      // Predicated region
      $region133: #{tpu_custom_call.1} parent=5 // pred_check
        %p1318 = pneg %p1317
      $region134: #{tpu_custom_call.1} parent=5 // pred_check_branch
        %1320 = sbr.rel (%p1318) target = $region136
      $region135: #{tpu_custom_call.1} parent=5 // pred_region
        %s1321 = ssub.s32 %s11, 2
        // Predicated region
        $region137: #{tpu_custom_call.1} parent=135 // pred_check
          %p1322 = pneg %p113
        $region138: #{tpu_custom_call.1} parent=135 // pred_check_branch
          %1324 = sbr.rel (%p1322) target = $region140
        $region139: #{tpu_custom_call.1} parent=135 // pred_region
          %s1325 = sand.u32 %s98, 1
          %s1326 = sand.u32 %s98, 1
          %s1327 = smul.addr %s1326, 128
          %s1328 = scalar_lea.vmem [#allocation2], %s1327
        $region140: #{tpu_custom_call.1} parent=135 // pred_fallthru
          _
        // Predicated region
        $region141: #{tpu_custom_call.1} parent=135 // pred_check
          %p1329 = pneg %p139
        $region142: #{tpu_custom_call.1} parent=135 // pred_check_branch
          %1331 = sbr.rel (%p1329) target = $region144
        $region143: #{tpu_custom_call.1} parent=135 // pred_region
          %s1332 = sand.u32 %s124, 1
          %s1333 = sand.u32 %s124, 1
          %s1334 = smul.addr %s1333, 32
          %s1335 = scalar_lea.vmem [#allocation3], %s1334
        $region144: #{tpu_custom_call.1} parent=135 // pred_fallthru
          _
      $region136: #{tpu_custom_call.1} parent=5 // pred_fallthru
        _
    $region6: #{tpu_custom_call.1} parent=1 // loop_footer
      %s15 = sadd.s32 1, %s11
    $region7: #{tpu_custom_call.1} parent=1 // loop_footer_branch
      %10 = sbr.rel target = $region3
    $region8: #{tpu_custom_call.1} parent=1 // loop_exit
      _

</llo_original>
